<compile_context>
chip_gen: v6e
topology: v6e:2x2x1
jax: 0.10.0
libtpu: 0.0.40
codegen_flags: <defaults>
</compile_context>

<pallas_src>
import math

import jax
import jax.numpy as jnp
import numpy as np
from jax.experimental import pallas as pl
from jax.experimental.pallas import tpu as pltpu

# pl.Squeezed() drops the leading size-1 grid dim from the kernel refs; fall
# back to the equivalent `None` block dim on older JAX versions.
_SQUEEZED = pl.Squeezed() if hasattr(pl, "Squeezed") else None


def _tpu_info():
    """Best-effort hardware query; conservative fallbacks if unavailable."""
    vmem_bytes = 32 << 20          # conservative default scoped-VMEM assumption
    num_tensorcores = 1
    try:
        vmem_bytes = int(pltpu.get_tpu_info().vmem_capacity_bytes)
    except Exception:
        pass
    try:
        kind = jax.devices()[0].device_kind.lower()
        # v7x has 2 TensorCores per chip; v4/v5p megacore also benefits from
        # a >=2-step grid under dimension_semantics=("parallel",).
        if any(tag in kind for tag in ("v7", "v4", "v5p")):
            num_tensorcores = 2
    except Exception:
        pass
    return vmem_bytes, num_tensorcores


def _choose_slabs_per_step(bt, n):
    """Pick TB = number of (b, t) slabs fused per grid step.

    The (TB*N)^2 bf16 aggregator is the binding VMEM term for large N, so the
    row cap is derived from VMEM capacity; on single-TC chips we take the
    largest divisor of B*T under the cap (fewest grid steps, widest lanes),
    on dual-TC chips we keep >= 2 grid steps so both cores get work.
    """
    vmem_bytes, num_tc = _tpu_info()
    agg_budget = max(vmem_bytes // 8, 4 << 20)          # bytes for the aggregator
    tbn_cap = int(math.isqrt(max(agg_budget // 2, 1)))  # bf16 = 2 B/elem
    tbn_cap = min(tbn_cap, 2048)                        # kron FLOPs grow ~TBN^2
    cap = max(1, tbn_cap // max(n, 1))
    if num_tc >= 2 and bt >= 2:
        cap = min(cap, bt // 2)                         # feed both TensorCores
    tb = 1
    for d in range(1, bt + 1):
        if bt % d == 0 and d <= cap:
            tb = d
    return tb


def _pack_biases(params):
    """Concatenate the four biases into one sublane-aligned (H_total, 1) f32
    operand; returns the packed array and per-bias (offset, length) slices."""
    f32 = jnp.float32
    segs, slices, off = [], [], 0
    for name in ("b1", "b2", "b3", "b4"):
        v = jnp.asarray(params[name], dtype=f32).reshape(-1, 1)   # (H, 1)
        h = v.shape[0]
        hp = -(-h // 8) * 8                                       # round up to 8 sublanes
        segs.append(jnp.pad(v, ((0, hp - h), (0, 0))))
        slices.append((off, h))
        off += hp
    return jnp.concatenate(segs, axis=0), tuple(slices)


def _make_kernel(bias_slices):
    (o1, h1), (o2, h2), (o3, h3), (o4, h4) = bias_slices

    def kernel(x_ref, aggT_ref, w1_ref, w2_ref, w3_ref, w4_ref, b_ref, o_ref):
        """One grid step = TB fused (batch, time) slabs, channel-major.

        x_ref   : (C_in, TB*N)   bf16   (columns ordered slab-major, vertex-minor)
        aggT_ref: (TB*N, TB*N)   bf16   kron(I_TB, (I+A)^T) block-diag aggregator
        wK_ref  : (H_out, H_in)  bf16   nn.Linear layout (y^T = W @ x^T)
        b_ref   : (H_total, 1)   f32    packed biases, static-offset slices
        o_ref   : (C_out, TB*N)  f32    lane-dense output
        """
        bf16 = jnp.bfloat16
        f32 = jnp.float32

        xT = x_ref[...]              # (C_in, TBN)
        aggT = aggT_ref[...]         # (TBN, TBN)

        # ---- GIN layer 1: aggregate (self + in-neighbor sum), then MLP1 ----
        h = jnp.dot(xT, aggT, preferred_element_type=f32)                      # (C_in, TBN)
        h = jnp.dot(w1_ref[...], h.astype(bf16), preferred_element_type=f32)   # (H1, TBN)
        h = jnp.maximum(h + b_ref[o1:o1 + h1, :], 0.0)                         # ReLU in MLP1
        h = jnp.dot(w2_ref[...], h.astype(bf16), preferred_element_type=f32)   # (C_out, TBN)
        h = h + b_ref[o2:o2 + h2, :]

        # ---- GIN layer 2: aggregate, then MLP2 ----
        g = jnp.dot(h.astype(bf16), aggT, preferred_element_type=f32)          # (C_out, TBN)
        g = jnp.dot(w3_ref[...], g.astype(bf16), preferred_element_type=f32)   # (H2, TBN)
        g = jnp.maximum(g + b_ref[o3:o3 + h3, :], 0.0)                         # ReLU in MLP2
        g = jnp.dot(w4_ref[...], g.astype(bf16), preferred_element_type=f32)   # (C_out, TBN)
        g = g + b_ref[o4:o4 + h4, :]

        # ---- final ReLU of SpatialConvLayer.forward; unmasked lane-dense vst ----
        o_ref[...] = jnp.maximum(g, 0.0)

    return kernel


def spatial_conv_layer(x_matrix, adj_plus_i, params, *, slabs_per_step=None):
    """Pallas-backed forward of SpatialConvLayer (GIN, K=2, eps=0).

    x_matrix   : (B, N, C_in, T) float32
    adj_plus_i : (N, N) float32, equal to I + A with A[i, j] = #edges j->i
    params     : dict with w1..w4 in nn.Linear (out, in) layout and b1..b4 (out,)
    returns    : (B, N, C_out, T) float32
    """
    B, N, C_in, T = x_matrix.shape
    H1 = params["w1"].shape[0]
    C_out = params["w2"].shape[0]
    H2 = params["w3"].shape[0]
    BT = B * T

    TB = slabs_per_step if slabs_per_step is not None else _choose_slabs_per_step(BT, N)
    assert BT % TB == 0, "slabs_per_step must divide B*T"
    G = BT // TB          # grid length
    TBN = TB * N          # fused lane width

    bf16 = jnp.bfloat16
    f32 = jnp.float32

    # (B, N, C_in, T) -> channel-major slabs (G, C_in, TB*N), columns ordered
    # slab-major / vertex-minor.  Produced in one fused XLA pass, already bf16.
    x_cm = jnp.transpose(x_matrix.astype(bf16), (0, 3, 2, 1))                  # (B, T, C_in, N)
    x_cm = jnp.transpose(x_cm.reshape(G, TB, C_in, N), (0, 2, 1, 3))           # (G, C_in, TB, N)
    x_cm = x_cm.reshape(G, C_in, TBN)

    # Transposed block-diagonal aggregator kron(I_TB, (I+A)^T): in the
    # channel-major layout aggregation is x^T @ agg^T.  A is transposed
    # explicitly (it is not symmetric for general edge_index).  Edge counts are
    # small integers -> exact in bf16.
    aggT = jnp.kron(jnp.eye(TB, dtype=f32), adj_plus_i.T.astype(f32)).astype(bf16)

    w1 = jnp.asarray(params["w1"], bf16)
    w2 = jnp.asarray(params["w2"], bf16)
    w3 = jnp.asarray(params["w3"], bf16)
    w4 = jnp.asarray(params["w4"], bf16)
    bias_packed, bias_slices = _pack_biases(params)

    kernel = _make_kernel(bias_slices)

    # Advisory cost hint.  Grid-constant operands are DMAed once (constant
    # index_map), so they are counted once, not G times.
    flops = 2 * G * TBN * (C_in * TBN + H1 * C_in + C_out * H1
                           + C_out * TBN + H2 * C_out + C_out * H2)
    bytes_accessed = (x_cm.size * 2 + G * C_out * TBN * 4
                      + aggT.size * 2
                      + sum(a.size * 2 for a in (w1, w2, w3, w4))
                      + bias_packed.size * 4)

    def build(single_buffer):
        def const_spec(arr):
            kwargs = {}
            if single_buffer and hasattr(pl, "Buffered"):
                # Grid-constant operand: a second pipeline buffer is pure waste
                # (matters most for v7x's 64 MiB VMEM as N grows).
                kwargs["pipeline_mode"] = pl.Buffered(1)
            return pl.BlockSpec(arr.shape, lambda i: (0,) * arr.ndim, **kwargs)

        return pl.pallas_call(
            kernel,
            out_shape=jax.ShapeDtypeStruct((G, C_out, TBN), f32),
            grid_spec=pltpu.PrefetchScalarGridSpec(
                num_scalar_prefetch=0,
                grid=(G,),
                in_specs=[
                    pl.BlockSpec((_SQUEEZED, C_in, TBN), lambda i: (i, 0, 0)),  # x slab
                    const_spec(aggT),                                           # kron(I, (I+A)^T)
                    const_spec(w1), const_spec(w2),                             # MLP1
                    const_spec(w3), const_spec(w4),                             # MLP2
                    const_spec(bias_packed),                                    # packed biases
                ],
                out_specs=pl.BlockSpec((_SQUEEZED, C_out, TBN), lambda i: (i, 0, 0)),
            ),
            compiler_params=pltpu.CompilerParams(
                dimension_semantics=("parallel",)),
            cost_estimate=pl.CostEstimate(flops=int(flops), transcendentals=0,
                                          bytes_accessed=int(bytes_accessed)),
        )

    args = (x_cm, aggT, w1, w2, w3, w4, bias_packed)
    try:
        out_flat = build(single_buffer=True)(*args)
    except Exception:
        # pipeline_mode=pl.Buffered(1) not supported on this JAX/Mosaic version;
        # fall back to default double-buffering (correctness unaffected).
        out_flat = build(single_buffer=False)(*args)

    # (G, C_out, TB*N) -> (B, T, N, C_out) -> (B, N, C_out, T)  (module's layout).
    out = jnp.transpose(out_flat.reshape(G, C_out, TB, N), (0, 2, 3, 1))       # (G, TB, N, C_out)
    out = jnp.transpose(out.reshape(B, T, N, C_out), (0, 2, 3, 1))             # (B, N, C_out, T)
    return out


def _reference(x_matrix, adj_plus_i, params):
    """Pure-JAX reference with the same bf16-operand / f32-accumulate policy."""
    B, N, C_in, T = x_matrix.shape
    bf16 = jnp.bfloat16
    f32 = jnp.float32

    x = jnp.transpose(x_matrix, (0, 3, 1, 2)).reshape(B * T, N, C_in)
    a = adj_plus_i.astype(bf16)

    def aggregate(v):  # self term + in-neighbor sum, via (I + A)
        return jnp.einsum("ij,bjc->bic", a, v.astype(bf16), preferred_element_type=f32)

    def linear(v, w, b):  # nn.Linear layout: (out, in) weight, (out,) bias
        return (jnp.einsum("bnc,hc->bnh", v.astype(bf16), jnp.asarray(w, bf16),
                           preferred_element_type=f32)
                + jnp.asarray(b, f32).reshape(1, 1, -1))

    h = aggregate(x)
    h = jnp.maximum(linear(h, params["w1"], params["b1"]), 0.0)
    h = linear(h, params["w2"], params["b2"])
    g = aggregate(h)
    g = jnp.maximum(linear(g, params["w3"], params["b3"]), 0.0)
    g = linear(g, params["w4"], params["b4"])
    g = jnp.maximum(g, 0.0)
    C_out = g.shape[-1]
    return jnp.transpose(g.reshape(B, T, N, C_out), (0, 2, 3, 1))


if __name__ == "__main__":
    # Small shapes consistent with the module's forward.
    B, N, C_in, C_out, T = 2, 16, 4, 8, 8
    H1, H2 = 4 * C_in, 4 * C_out

    key = jax.random.PRNGKey(0)
    keys = jax.random.split(key, 10)

    # Deterministic edge_index: bidirectional ring over N vertices.
    src = np.arange(N)
    dst = (np.arange(N) + 1) % N
    edge_index = np.stack([np.concatenate([src, dst]),
                           np.concatenate([dst, src])], axis=0)  # (2, E)

    # Dense aggregation operator: A[t, s] += 1 per edge s->t; use (I + A).
    A = np.zeros((N, N), dtype=np.float32)
    for s, t in zip(edge_index[0], edge_index[1]):
        A[t, s] += 1.0
    adj_plus_i = jnp.asarray(A + np.eye(N, dtype=np.float32))

    # Deterministic parameter init (synthetic; nn.Linear (out, in) layout).
    def init(k, shape, scale=0.1):
        return (scale * jax.random.normal(k, shape)).astype(jnp.float32)

    params = {
        "w1": init(keys[0], (H1, C_in)),   "b1": init(keys[1], (H1,)),
        "w2": init(keys[2], (C_out, H1)),  "b2": init(keys[3], (C_out,)),
        "w3": init(keys[4], (H2, C_out)),  "b3": init(keys[5], (H2,)),
        "w4": init(keys[6], (C_out, H2)),  "b4": init(keys[7], (C_out,)),
    }

    x_matrix = jax.random.normal(keys[8], (B, N, C_in, T), dtype=jnp.float32)

    out = spatial_conv_layer(x_matrix, adj_plus_i, params)
    out = jax.block_until_ready(out)

    ref = jax.block_until_ready(_reference(x_matrix, adj_plus_i, params))
    assert out.shape == (B, N, C_out, T)
    np.testing.assert_allclose(np.asarray(out), np.asarray(ref), rtol=1e-3, atol=1e-4)

    print("KERNEL_OK")
</pallas_src>

<mosaic_0001>
module attributes {stable_mosaic.version = 11 : i64} {
  func.func @kernel(%arg0: i32, %arg1: memref<1x4x256xbf16, #tpu.memory_space<vmem>>, %arg2: memref<256x256xbf16, #tpu.memory_space<vmem>>, %arg3: memref<16x4xbf16, #tpu.memory_space<vmem>>, %arg4: memref<8x16xbf16, #tpu.memory_space<vmem>>, %arg5: memref<32x8xbf16, #tpu.memory_space<vmem>>, %arg6: memref<8x32xbf16, #tpu.memory_space<vmem>>, %arg7: memref<64x1xf32, #tpu.memory_space<vmem>>, %arg8: memref<1x8x256xf32, #tpu.memory_space<vmem>>) attributes {dimension_semantics = [#tpu.dimension_semantics<parallel>], iteration_bounds = array<i64: 1>, scalar_prefetch = 0 : i64, scratch_operands = 0 : i64, tpu.core_type = #tpu.core_type<tc>, window_params = [{transform_indices = @transform_0, window_bounds = array<i64: 1, 4, 256>}, {pipeline_mode = #tpu.pipeline_mode<synchronous>, transform_indices = @transform_1, window_bounds = array<i64: 256, 256>}, {pipeline_mode = #tpu.pipeline_mode<synchronous>, transform_indices = @transform_2, window_bounds = array<i64: 16, 4>}, {pipeline_mode = #tpu.pipeline_mode<synchronous>, transform_indices = @transform_3, window_bounds = array<i64: 8, 16>}, {pipeline_mode = #tpu.pipeline_mode<synchronous>, transform_indices = @transform_4, window_bounds = array<i64: 32, 8>}, {pipeline_mode = #tpu.pipeline_mode<synchronous>, transform_indices = @transform_5, window_bounds = array<i64: 8, 32>}, {pipeline_mode = #tpu.pipeline_mode<synchronous>, transform_indices = @transform_6, window_bounds = array<i64: 64, 1>}, {transform_indices = @transform_7, window_bounds = array<i64: 1, 8, 256>}]} {
    %c0 = arith.constant 0 : index
    %c0_0 = arith.constant 0 : index
    %c0_1 = arith.constant 0 : index
    %0 = vector.load %arg1[%c0, %c0_0, %c0_1] : memref<1x4x256xbf16, #tpu.memory_space<vmem>>, vector<1x4x256xbf16>
    %1 = vector.shape_cast %0 : vector<1x4x256xbf16> to vector<4x256xbf16>
    %c0_2 = arith.constant 0 : index
    %c0_3 = arith.constant 0 : index
    %2 = vector.load %arg2[%c0_2, %c0_3] : memref<256x256xbf16, #tpu.memory_space<vmem>>, vector<256x256xbf16>
    %cst = arith.constant dense<0.000000e+00> : vector<4x256xf32>
    %3 = tpu.matmul %1, %2, %cst {dimension_numbers = #tpu.dot_dimension_numbers<[1], [0], [0], [1], [0, 0, 1, 1], [], []>} : vector<4x256xbf16>, vector<256x256xbf16>, vector<4x256xf32> -> vector<4x256xf32>
    %c0_4 = arith.constant 0 : index
    %c0_5 = arith.constant 0 : index
    %4 = vector.load %arg3[%c0_4, %c0_5] : memref<16x4xbf16, #tpu.memory_space<vmem>>, vector<16x4xbf16>
    %5 = arith.truncf %3 : vector<4x256xf32> to vector<4x256xbf16>
    %cst_6 = arith.constant dense<0.000000e+00> : vector<16x256xf32>
    %6 = tpu.matmul %4, %5, %cst_6 {dimension_numbers = #tpu.dot_dimension_numbers<[1], [0], [0], [1], [0, 0, 1, 1], [], []>} : vector<16x4xbf16>, vector<4x256xbf16>, vector<16x256xf32> -> vector<16x256xf32>
    %c0_7 = arith.constant 0 : index
    %c0_8 = arith.constant 0 : index
    %7 = vector.load %arg7[%c0_7, %c0_8] : memref<64x1xf32, #tpu.memory_space<vmem>>, vector<16x1xf32>
    %8 = vector.broadcast %7 : vector<16x1xf32> to vector<16x256xf32>
    %9 = arith.addf %6, %8 : vector<16x256xf32>
    %cst_9 = arith.constant 0.000000e+00 : f32
    %10 = vector.broadcast %cst_9 : f32 to vector<16x256xf32>
    %11 = arith.maximumf %9, %10 : vector<16x256xf32>
    %c0_10 = arith.constant 0 : index
    %c0_11 = arith.constant 0 : index
    %12 = vector.load %arg4[%c0_10, %c0_11] : memref<8x16xbf16, #tpu.memory_space<vmem>>, vector<8x16xbf16>
    %13 = arith.truncf %11 : vector<16x256xf32> to vector<16x256xbf16>
    %cst_12 = arith.constant dense<0.000000e+00> : vector<8x256xf32>
    %14 = tpu.matmul %12, %13, %cst_12 {dimension_numbers = #tpu.dot_dimension_numbers<[1], [0], [0], [1], [0, 0, 1, 1], [], []>} : vector<8x16xbf16>, vector<16x256xbf16>, vector<8x256xf32> -> vector<8x256xf32>
    %c16 = arith.constant 16 : index
    %c0_13 = arith.constant 0 : index
    %15 = vector.load %arg7[%c16, %c0_13] : memref<64x1xf32, #tpu.memory_space<vmem>>, vector<8x1xf32>
    %16 = vector.broadcast %15 : vector<8x1xf32> to vector<8x256xf32>
    %17 = arith.addf %14, %16 : vector<8x256xf32>
    %18 = arith.truncf %17 : vector<8x256xf32> to vector<8x256xbf16>
    %cst_14 = arith.constant dense<0.000000e+00> : vector<8x256xf32>
    %19 = tpu.matmul %18, %2, %cst_14 {dimension_numbers = #tpu.dot_dimension_numbers<[1], [0], [0], [1], [0, 0, 1, 1], [], []>} : vector<8x256xbf16>, vector<256x256xbf16>, vector<8x256xf32> -> vector<8x256xf32>
    %c0_15 = arith.constant 0 : index
    %c0_16 = arith.constant 0 : index
    %20 = vector.load %arg5[%c0_15, %c0_16] : memref<32x8xbf16, #tpu.memory_space<vmem>>, vector<32x8xbf16>
    %21 = arith.truncf %19 : vector<8x256xf32> to vector<8x256xbf16>
    %cst_17 = arith.constant dense<0.000000e+00> : vector<32x256xf32>
    %22 = tpu.matmul %20, %21, %cst_17 {dimension_numbers = #tpu.dot_dimension_numbers<[1], [0], [0], [1], [0, 0, 1, 1], [], []>} : vector<32x8xbf16>, vector<8x256xbf16>, vector<32x256xf32> -> vector<32x256xf32>
    %c24 = arith.constant 24 : index
    %c0_18 = arith.constant 0 : index
    %23 = vector.load %arg7[%c24, %c0_18] : memref<64x1xf32, #tpu.memory_space<vmem>>, vector<32x1xf32>
    %24 = vector.broadcast %23 : vector<32x1xf32> to vector<32x256xf32>
    %25 = arith.addf %22, %24 : vector<32x256xf32>
    %cst_19 = arith.constant 0.000000e+00 : f32
    %26 = vector.broadcast %cst_19 : f32 to vector<32x256xf32>
    %27 = arith.maximumf %25, %26 : vector<32x256xf32>
    %c0_20 = arith.constant 0 : index
    %c0_21 = arith.constant 0 : index
    %28 = vector.load %arg6[%c0_20, %c0_21] : memref<8x32xbf16, #tpu.memory_space<vmem>>, vector<8x32xbf16>
    %29 = arith.truncf %27 : vector<32x256xf32> to vector<32x256xbf16>
    %cst_22 = arith.constant dense<0.000000e+00> : vector<8x256xf32>
    %30 = tpu.matmul %28, %29, %cst_22 {dimension_numbers = #tpu.dot_dimension_numbers<[1], [0], [0], [1], [0, 0, 1, 1], [], []>} : vector<8x32xbf16>, vector<32x256xbf16>, vector<8x256xf32> -> vector<8x256xf32>
    %c56 = arith.constant 56 : index
    %c0_23 = arith.constant 0 : index
    %31 = vector.load %arg7[%c56, %c0_23] : memref<64x1xf32, #tpu.memory_space<vmem>>, vector<8x1xf32>
    %32 = vector.broadcast %31 : vector<8x1xf32> to vector<8x256xf32>
    %33 = arith.addf %30, %32 : vector<8x256xf32>
    %cst_24 = arith.constant 0.000000e+00 : f32
    %34 = vector.broadcast %cst_24 : f32 to vector<8x256xf32>
    %35 = arith.maximumf %33, %34 : vector<8x256xf32>
    %c0_25 = arith.constant 0 : index
    %c0_26 = arith.constant 0 : index
    %c0_27 = arith.constant 0 : index
    %36 = vector.load %arg8[%c0_25, %c0_26, %c0_27] : memref<1x8x256xf32, #tpu.memory_space<vmem>>, vector<1x8x256xf32>
    %37 = vector.shape_cast %36 : vector<1x8x256xf32> to vector<8x256xf32>
    %38 = vector.shape_cast %35 : vector<8x256xf32> to vector<1x8x256xf32>
    tpu.vector_store %arg8[%c0_25, %c0_26, %c0_27], %38 {strides = array<i32>} : memref<1x8x256xf32, #tpu.memory_space<vmem>>, vector<1x8x256xf32>,
    return
  }
  func.func @transform_0(%arg0: i32) -> (i32, i32, i32) {
    %c0_i32 = arith.constant 0 : i32
    %c0_i32_0 = arith.constant 0 : i32
    %c0_i32_1 = arith.constant 0 : i32
    return %arg0, %c0_i32, %c0_i32_0 : i32, i32, i32
  }
  func.func @transform_1(%arg0: i32) -> (i32, i32) {
    %c0_i32 = arith.constant 0 : i32
    %c0_i32_0 = arith.constant 0 : i32
    %c0_i32_1 = arith.constant 0 : i32
    return %c0_i32, %c0_i32_0 : i32, i32
  }
  func.func @transform_2(%arg0: i32) -> (i32, i32) {
    %c0_i32 = arith.constant 0 : i32
    %c0_i32_0 = arith.constant 0 : i32
    %c0_i32_1 = arith.constant 0 : i32
    return %c0_i32, %c0_i32_0 : i32, i32
  }
  func.func @transform_3(%arg0: i32) -> (i32, i32) {
    %c0_i32 = arith.constant 0 : i32
    %c0_i32_0 = arith.constant 0 : i32
    %c0_i32_1 = arith.constant 0 : i32
    return %c0_i32, %c0_i32_0 : i32, i32
  }
  func.func @transform_4(%arg0: i32) -> (i32, i32) {
    %c0_i32 = arith.constant 0 : i32
    %c0_i32_0 = arith.constant 0 : i32
    %c0_i32_1 = arith.constant 0 : i32
    return %c0_i32, %c0_i32_0 : i32, i32
  }
  func.func @transform_5(%arg0: i32) -> (i32, i32) {
    %c0_i32 = arith.constant 0 : i32
    %c0_i32_0 = arith.constant 0 : i32
    %c0_i32_1 = arith.constant 0 : i32
    return %c0_i32, %c0_i32_0 : i32, i32
  }
  func.func @transform_6(%arg0: i32) -> (i32, i32) {
    %c0_i32 = arith.constant 0 : i32
    %c0_i32_0 = arith.constant 0 : i32
    %c0_i32_1 = arith.constant 0 : i32
    return %c0_i32, %c0_i32_0 : i32, i32
  }
  func.func @transform_7(%arg0: i32) -> (i32, i32, i32) {
    %c0_i32 = arith.constant 0 : i32
    %c0_i32_0 = arith.constant 0 : i32
    %c0_i32_1 = arith.constant 0 : i32
    return %arg0, %c0_i32, %c0_i32_0 : i32, i32, i32
  }
}

module attributes {stable_mosaic.version = 11 : i64} {
  func.func @kernel(%arg0: i32, %arg1: memref<1x4x256xbf16, #tpu.memory_space<vmem>>, %arg2: memref<256x256xbf16, #tpu.memory_space<vmem>>, %arg3: memref<16x4xbf16, #tpu.memory_space<vmem>>, %arg4: memref<8x16xbf16, #tpu.memory_space<vmem>>, %arg5: memref<32x8xbf16, #tpu.memory_space<vmem>>, %arg6: memref<8x32xbf16, #tpu.memory_space<vmem>>, %arg7: memref<64x1xf32, #tpu.memory_space<vmem>>, %arg8: memref<1x8x256xf32, #tpu.memory_space<vmem>>) attributes {dimension_semantics = [#tpu.dimension_semantics<parallel>], iteration_bounds = array<i64: 1>, scalar_prefetch = 0 : i64, scratch_operands = 0 : i64, tpu.core_type = #tpu.core_type<tc>, window_params = [{transform_indices = @transform_0, window_bounds = array<i64: 1, 4, 256>}, {pipeline_mode = #tpu.pipeline_mode<synchronous>, transform_indices = @transform_1, window_bounds = array<i64: 256, 256>}, {pipeline_mode = #tpu.pipeline_mode<synchronous>, transform_indices = @transform_2, window_bounds = array<i64: 16, 4>}, {pipeline_mode = #tpu.pipeline_mode<synchronous>, transform_indices = @transform_3, window_bounds = array<i64: 8, 16>}, {pipeline_mode = #tpu.pipeline_mode<synchronous>, transform_indices = @transform_4, window_bounds = array<i64: 32, 8>}, {pipeline_mode = #tpu.pipeline_mode<synchronous>, transform_indices = @transform_5, window_bounds = array<i64: 8, 32>}, {pipeline_mode = #tpu.pipeline_mode<synchronous>, transform_indices = @transform_6, window_bounds = array<i64: 64, 1>}, {transform_indices = @transform_7, window_bounds = array<i64: 1, 8, 256>}]} {
    %c0 = arith.constant 0 : index
    %c0_0 = arith.constant 0 : index
    %c0_1 = arith.constant 0 : index
    %0 = vector.load %arg1[%c0, %c0_0, %c0_1] : memref<1x4x256xbf16, #tpu.memory_space<vmem>>, vector<1x4x256xbf16>
    %1 = vector.shape_cast %0 : vector<1x4x256xbf16> to vector<4x256xbf16>
    %c0_2 = arith.constant 0 : index
    %c0_3 = arith.constant 0 : index
    %2 = vector.load %arg2[%c0_2, %c0_3] : memref<256x256xbf16, #tpu.memory_space<vmem>>, vector<256x256xbf16>
    %cst = arith.constant dense<0.000000e+00> : vector<4x256xf32>
    %3 = tpu.matmul %1, %2, %cst {dimension_numbers = #tpu.dot_dimension_numbers<[1], [0], [0], [1], [0, 0, 1, 1], [], []>} : vector<4x256xbf16>, vector<256x256xbf16>, vector<4x256xf32> -> vector<4x256xf32>
    %c0_4 = arith.constant 0 : index
    %c0_5 = arith.constant 0 : index
    %4 = vector.load %arg3[%c0_4, %c0_5] : memref<16x4xbf16, #tpu.memory_space<vmem>>, vector<16x4xbf16>
    %5 = arith.truncf %3 : vector<4x256xf32> to vector<4x256xbf16>
    %cst_6 = arith.constant dense<0.000000e+00> : vector<16x256xf32>
    %6 = tpu.matmul %4, %5, %cst_6 {dimension_numbers = #tpu.dot_dimension_numbers<[1], [0], [0], [1], [0, 0, 1, 1], [], []>} : vector<16x4xbf16>, vector<4x256xbf16>, vector<16x256xf32> -> vector<16x256xf32>
    %c0_7 = arith.constant 0 : index
    %c0_8 = arith.constant 0 : index
    %7 = vector.load %arg7[%c0_7, %c0_8] : memref<64x1xf32, #tpu.memory_space<vmem>>, vector<16x1xf32>
    %8 = vector.broadcast %7 : vector<16x1xf32> to vector<16x256xf32>
    %9 = arith.addf %6, %8 : vector<16x256xf32>
    %cst_9 = arith.constant 0.000000e+00 : f32
    %10 = vector.broadcast %cst_9 : f32 to vector<16x256xf32>
    %11 = arith.maximumf %9, %10 : vector<16x256xf32>
    %c0_10 = arith.constant 0 : index
    %c0_11 = arith.constant 0 : index
    %12 = vector.load %arg4[%c0_10, %c0_11] : memref<8x16xbf16, #tpu.memory_space<vmem>>, vector<8x16xbf16>
    %13 = arith.truncf %11 : vector<16x256xf32> to vector<16x256xbf16>
    %cst_12 = arith.constant dense<0.000000e+00> : vector<8x256xf32>
    %14 = tpu.matmul %12, %13, %cst_12 {dimension_numbers = #tpu.dot_dimension_numbers<[1], [0], [0], [1], [0, 0, 1, 1], [], []>} : vector<8x16xbf16>, vector<16x256xbf16>, vector<8x256xf32> -> vector<8x256xf32>
    %c16 = arith.constant 16 : index
    %c0_13 = arith.constant 0 : index
    %15 = vector.load %arg7[%c16, %c0_13] : memref<64x1xf32, #tpu.memory_space<vmem>>, vector<8x1xf32>
    %16 = vector.broadcast %15 : vector<8x1xf32> to vector<8x256xf32>
    %17 = arith.addf %14, %16 : vector<8x256xf32>
    %18 = arith.truncf %17 : vector<8x256xf32> to vector<8x256xbf16>
    %cst_14 = arith.constant dense<0.000000e+00> : vector<8x256xf32>
    %19 = tpu.matmul %18, %2, %cst_14 {dimension_numbers = #tpu.dot_dimension_numbers<[1], [0], [0], [1], [0, 0, 1, 1], [], []>} : vector<8x256xbf16>, vector<256x256xbf16>, vector<8x256xf32> -> vector<8x256xf32>
    %c0_15 = arith.constant 0 : index
    %c0_16 = arith.constant 0 : index
    %20 = vector.load %arg5[%c0_15, %c0_16] : memref<32x8xbf16, #tpu.memory_space<vmem>>, vector<32x8xbf16>
    %21 = arith.truncf %19 : vector<8x256xf32> to vector<8x256xbf16>
    %cst_17 = arith.constant dense<0.000000e+00> : vector<32x256xf32>
    %22 = tpu.matmul %20, %21, %cst_17 {dimension_numbers = #tpu.dot_dimension_numbers<[1], [0], [0], [1], [0, 0, 1, 1], [], []>} : vector<32x8xbf16>, vector<8x256xbf16>, vector<32x256xf32> -> vector<32x256xf32>
    %c24 = arith.constant 24 : index
    %c0_18 = arith.constant 0 : index
    %23 = vector.load %arg7[%c24, %c0_18] : memref<64x1xf32, #tpu.memory_space<vmem>>, vector<32x1xf32>
    %24 = vector.broadcast %23 : vector<32x1xf32> to vector<32x256xf32>
    %25 = arith.addf %22, %24 : vector<32x256xf32>
    %cst_19 = arith.constant 0.000000e+00 : f32
    %26 = vector.broadcast %cst_19 : f32 to vector<32x256xf32>
    %27 = arith.maximumf %25, %26 : vector<32x256xf32>
    %c0_20 = arith.constant 0 : index
    %c0_21 = arith.constant 0 : index
    %28 = vector.load %arg6[%c0_20, %c0_21] : memref<8x32xbf16, #tpu.memory_space<vmem>>, vector<8x32xbf16>
    %29 = arith.truncf %27 : vector<32x256xf32> to vector<32x256xbf16>
    %cst_22 = arith.constant dense<0.000000e+00> : vector<8x256xf32>
    %30 = tpu.matmul %28, %29, %cst_22 {dimension_numbers = #tpu.dot_dimension_numbers<[1], [0], [0], [1], [0, 0, 1, 1], [], []>} : vector<8x32xbf16>, vector<32x256xbf16>, vector<8x256xf32> -> vector<8x256xf32>
    %c56 = arith.constant 56 : index
    %c0_23 = arith.constant 0 : index
    %31 = vector.load %arg7[%c56, %c0_23] : memref<64x1xf32, #tpu.memory_space<vmem>>, vector<8x1xf32>
    %32 = vector.broadcast %31 : vector<8x1xf32> to vector<8x256xf32>
    %33 = arith.addf %30, %32 : vector<8x256xf32>
    %cst_24 = arith.constant 0.000000e+00 : f32
    %34 = vector.broadcast %cst_24 : f32 to vector<8x256xf32>
    %35 = arith.maximumf %33, %34 : vector<8x256xf32>
    %c0_25 = arith.constant 0 : index
    %c0_26 = arith.constant 0 : index
    %c0_27 = arith.constant 0 : index
    %36 = vector.load %arg8[%c0_25, %c0_26, %c0_27] : memref<1x8x256xf32, #tpu.memory_space<vmem>>, vector<1x8x256xf32>
    %37 = vector.shape_cast %36 : vector<1x8x256xf32> to vector<8x256xf32>
    %38 = vector.shape_cast %35 : vector<8x256xf32> to vector<1x8x256xf32>
    tpu.vector_store %arg8[%c0_25, %c0_26, %c0_27], %38 {strides = array<i32>} : memref<1x8x256xf32, #tpu.memory_space<vmem>>, vector<1x8x256xf32>,
    return
  }
  func.func @transform_0(%arg0: i32) -> (i32, i32, i32) {
    %c0_i32 = arith.constant 0 : i32
    %c0_i32_0 = arith.constant 0 : i32
    %c0_i32_1 = arith.constant 0 : i32
    return %arg0, %c0_i32, %c0_i32_0 : i32, i32, i32
  }
  func.func @transform_1(%arg0: i32) -> (i32, i32) {
    %c0_i32 = arith.constant 0 : i32
    %c0_i32_0 = arith.constant 0 : i32
    %c0_i32_1 = arith.constant 0 : i32
    return %c0_i32, %c0_i32_0 : i32, i32
  }
  func.func @transform_2(%arg0: i32) -> (i32, i32) {
    %c0_i32 = arith.constant 0 : i32
    %c0_i32_0 = arith.constant 0 : i32
    %c0_i32_1 = arith.constant 0 : i32
    return %c0_i32, %c0_i32_0 : i32, i32
  }
  func.func @transform_3(%arg0: i32) -> (i32, i32) {
    %c0_i32 = arith.constant 0 : i32
    %c0_i32_0 = arith.constant 0 : i32
    %c0_i32_1 = arith.constant 0 : i32
    return %c0_i32, %c0_i32_0 : i32, i32
  }
  func.func @transform_4(%arg0: i32) -> (i32, i32) {
    %c0_i32 = arith.constant 0 : i32
    %c0_i32_0 = arith.constant 0 : i32
    %c0_i32_1 = arith.constant 0 : i32
    return %c0_i32, %c0_i32_0 : i32, i32
  }
  func.func @transform_5(%arg0: i32) -> (i32, i32) {
    %c0_i32 = arith.constant 0 : i32
    %c0_i32_0 = arith.constant 0 : i32
    %c0_i32_1 = arith.constant 0 : i32
    return %c0_i32, %c0_i32_0 : i32, i32
  }
  func.func @transform_6(%arg0: i32) -> (i32, i32) {
    %c0_i32 = arith.constant 0 : i32
    %c0_i32_0 = arith.constant 0 : i32
    %c0_i32_1 = arith.constant 0 : i32
    return %c0_i32, %c0_i32_0 : i32, i32
  }
  func.func @transform_7(%arg0: i32) -> (i32, i32, i32) {
    %c0_i32 = arith.constant 0 : i32
    %c0_i32_0 = arith.constant 0 : i32
    %c0_i32_1 = arith.constant 0 : i32
    return %arg0, %c0_i32, %c0_i32_0 : i32, i32, i32
  }
}

</mosaic_0001>

<llo_original>
// kernel: tpu_custom_call.1
$region0: #{tpu_custom_call.1}
  #allocation0 [shape = 'u32[]', space=smem, size = 0x4, offset = 0x4, fixed_abs, tag = 'smem constant byte address 0x4 - core index']
  #allocation1 [shape = 'u32[144,128]{1,0:T(1,128)}', space=vmem, size = 0x12000, scoped, tag = 'internal scratch']
  %s0 = inlined_call_operand.vmem [shape: bf16[1,4,256], index: 0, kind: input, shape index: {}]
  %s1 = inlined_call_operand.hbm [shape: bf16[256,256], index: 1, kind: input, shape index: {}]
  %s2 = inlined_call_operand.vmem [shape: bf16[16,4], index: 2, kind: input, shape index: {}]
  %s3 = inlined_call_operand.vmem [shape: bf16[8,16], index: 3, kind: input, shape index: {}]
  %s4 = inlined_call_operand.vmem [shape: bf16[32,8], index: 4, kind: input, shape index: {}]
  %s5 = inlined_call_operand.vmem [shape: bf16[8,32], index: 5, kind: input, shape index: {}]
  %s6 = inlined_call_operand.vmem [shape: f32[64,1], index: 6, kind: input, shape index: {}]
  %s7 = inlined_call_operand.hbm [shape: f32[1,8,256], index: 7, kind: output, shape index: {}]
  %s8 = sld [smem:[#allocation0]]
  $region42: #{tpu_custom_call.1} parent=0
    _
  %s10 = ssub.s32 1, %s8
  %s11 = scalar_select 0, %s10, %s8
  $region1: #{tpu_custom_call.1} parent=0
    #allocation2 [shape = 'u8[131072]{0}', space=vmem, size = 0x20000, scoped, tag = 'input window, operand 1, single buffered']
    #allocation3 [shape = 's32[1]{0}', space=sflag, size = 0x4, scoped, tag = 'scoped memory for tpu_custom_call.1']
    #allocation4 [shape = 's32[1]{0}', space=sflag, size = 0x4, scoped, tag = 'scoped memory for tpu_custom_call.1']
    #allocation5 [shape = 'u8[8192]{0}', space=vmem, size = 0x2000, scoped, tag = 'output window, operand 0, single buffered']
    %12 = vsyncpa [#allocation3], 0
    %13 = vsyncpa [#allocation4], 0
    // Predicated region
    $region2: #{tpu_custom_call.1} parent=1 // pred_check
      _
    $region3: #{tpu_custom_call.1} parent=1 // pred_check_branch
      %15 = sbr.rel (0) target = $region5
    $region4: #{tpu_custom_call.1} parent=1 // pred_region
      _
    $region5: #{tpu_custom_call.1} parent=1 // pred_fallthru
      _
    // Predicated region
    $region6: #{tpu_custom_call.1} parent=1 // pred_check
      _
    $region7: #{tpu_custom_call.1} parent=1 // pred_check_branch
      %17 = sbr.rel (0) target = $region9
    $region8: #{tpu_custom_call.1} parent=1 // pred_region
      %s19 = ssub.s32 4096, 4096
      %20 = vsyncadd [#allocation3], %s19
      %s21 = sshll.u32 [#allocation2], 4
      %s22 = int_to_ptr.vmem [resolvable:$true] %s21
      %27 = dma.hbm_to_vmem [thread:$0]  %s1, 4096, %s22, [#allocation3], 128, 128, 8
    $region9: #{tpu_custom_call.1} parent=1 // pred_fallthru
      _
    // Predicated region
    $region10: #{tpu_custom_call.1} parent=1 // pred_check
      _
    $region11: #{tpu_custom_call.1} parent=1 // pred_check_branch
      %29 = sbr.rel (0) target = $region13
    $region12: #{tpu_custom_call.1} parent=1 // pred_region
      _
    $region13: #{tpu_custom_call.1} parent=1 // pred_fallthru
      _
    // Predicated region
    $region14: #{tpu_custom_call.1} parent=1 // pred_check
      _
    $region15: #{tpu_custom_call.1} parent=1 // pred_check_branch
      %31 = sbr.rel (0) target = $region17
    $region16: #{tpu_custom_call.1} parent=1 // pred_region
      _
    $region17: #{tpu_custom_call.1} parent=1 // pred_fallthru
      _
    // Predicated region
    $region18: #{tpu_custom_call.1} parent=1 // pred_check
      _
    $region19: #{tpu_custom_call.1} parent=1 // pred_check_branch
      %33 = sbr.rel (0) target = $region21
    $region20: #{tpu_custom_call.1} parent=1 // pred_region
      _
    $region21: #{tpu_custom_call.1} parent=1 // pred_fallthru
      _
    // Predicated region
    $region22: #{tpu_custom_call.1} parent=1 // pred_check
      _
    $region23: #{tpu_custom_call.1} parent=1 // pred_check_branch
      %35 = sbr.rel (0) target = $region25
    $region24: #{tpu_custom_call.1} parent=1 // pred_region
      _
    $region25: #{tpu_custom_call.1} parent=1 // pred_fallthru
      _
    // Predicated region
    $region26: #{tpu_custom_call.1} parent=1 // pred_check
      _
    $region27: #{tpu_custom_call.1} parent=1 // pred_check_branch
      %37 = sbr.rel (0) target = $region29
    $region28: #{tpu_custom_call.1} parent=1 // pred_region
      _
    $region29: #{tpu_custom_call.1} parent=1 // pred_fallthru
      _
    // Predicated region
    $region30: #{tpu_custom_call.1} parent=1 // pred_check
      _
    $region31: #{tpu_custom_call.1} parent=1 // pred_check_branch
      %39 = sbr.rel (0) target = $region33
    $region32: #{tpu_custom_call.1} parent=1 // pred_region
      %40 = dma.done [#allocation3], 4096
    $region33: #{tpu_custom_call.1} parent=1 // pred_fallthru
      _
    %v42 = vld [vmem:[%s0] sm:$0xf]
    %v43 = vld [vmem:[#allocation2] sm:$0xff]
    %v44 = vld [vmem:[#allocation2 + $0x8] sm:$0xff]
    %v45 = vld [vmem:[#allocation2 + $0x10] sm:$0xff]
    %v46 = vld [vmem:[#allocation2 + $0x18] sm:$0xff]
    %v47 = vld [vmem:[#allocation2 + $0x20] sm:$0xff]
    %v48 = vld [vmem:[#allocation2 + $0x28] sm:$0xff]
    %v49 = vld [vmem:[#allocation2 + $0x30] sm:$0xff]
    %v50 = vld [vmem:[#allocation2 + $0x38] sm:$0xff]
    %v51 = vld [vmem:[#allocation2 + $0x40] sm:$0xff]
    %v52 = vld [vmem:[#allocation2 + $0x48] sm:$0xff]
    %v53 = vld [vmem:[#allocation2 + $0x50] sm:$0xff]
    %v54 = vld [vmem:[#allocation2 + $0x58] sm:$0xff]
    %v55 = vld [vmem:[#allocation2 + $0x60] sm:$0xff]
    %v56 = vld [vmem:[#allocation2 + $0x68] sm:$0xff]
    %v57 = vld [vmem:[#allocation2 + $0x70] sm:$0xff]
    %v58 = vld [vmem:[#allocation2 + $0x78] sm:$0xff]
    %v59 = vld [vmem:[#allocation2 + $0x80] sm:$0xff]
    %v60 = vld [vmem:[#allocation2 + $0x88] sm:$0xff]
    %v61 = vld [vmem:[#allocation2 + $0x90] sm:$0xff]
    %v62 = vld [vmem:[#allocation2 + $0x98] sm:$0xff]
    %v63 = vld [vmem:[#allocation2 + $0xa0] sm:$0xff]
    %v64 = vld [vmem:[#allocation2 + $0xa8] sm:$0xff]
    %v65 = vld [vmem:[#allocation2 + $0xb0] sm:$0xff]
    %v66 = vld [vmem:[#allocation2 + $0xb8] sm:$0xff]
    %v67 = vld [vmem:[#allocation2 + $0xc0] sm:$0xff]
    %v68 = vld [vmem:[#allocation2 + $0xc8] sm:$0xff]
    %v69 = vld [vmem:[#allocation2 + $0xd0] sm:$0xff]
    %v70 = vld [vmem:[#allocation2 + $0xd8] sm:$0xff]
    %v71 = vld [vmem:[#allocation2 + $0xe0] sm:$0xff]
    %v72 = vld [vmem:[#allocation2 + $0xe8] sm:$0xff]
    %v73 = vld [vmem:[#allocation2 + $0xf0] sm:$0xff]
    %v74 = vld [vmem:[#allocation2 + $0xf8] sm:$0xff]
    %v77 = vunpack.c.l.s4 1983009808
    %v78 = vunpack.c.0.s8 %v77
    %v79 = vlaneseq
    %v80 = vshrl.u32 %v79, 7
    %v81 = vsub.s32 %v78, %v80
    %v82 = vrot.slane %v42, %v81
    %v83 = vcombine.high %v82, %v82
    %v118 = vunpack.c.l.b16 %v43
    %v119 = vunpack.c.h.b16 %v43
    %v120 = vunpack.c.l.b16 %v44
    %v121 = vunpack.c.h.b16 %v44
    %v122 = vunpack.c.l.b16 %v45
    %v123 = vunpack.c.h.b16 %v45
    %v124 = vunpack.c.l.b16 %v46
    %v125 = vunpack.c.h.b16 %v46
    %v126 = vunpack.c.l.b16 %v47
    %v127 = vunpack.c.h.b16 %v47
    %v128 = vunpack.c.l.b16 %v48
    %v129 = vunpack.c.h.b16 %v48
    %v130 = vunpack.c.l.b16 %v49
    %v131 = vunpack.c.h.b16 %v49
    %v132 = vunpack.c.l.b16 %v50
    %v133 = vunpack.c.h.b16 %v50
    %v134 = vunpack.c.l.b16 %v51
    %v135 = vunpack.c.h.b16 %v51
    %v136 = vunpack.c.l.b16 %v52
    %v137 = vunpack.c.h.b16 %v52
    %v138 = vunpack.c.l.b16 %v53
    %v139 = vunpack.c.h.b16 %v53
    %v140 = vunpack.c.l.b16 %v54
    %v141 = vunpack.c.h.b16 %v54
    %v142 = vunpack.c.l.b16 %v55
    %v143 = vunpack.c.h.b16 %v55
    %v144 = vunpack.c.l.b16 %v56
    %v145 = vunpack.c.h.b16 %v56
    %v146 = vunpack.c.l.b16 %v57
    %v147 = vunpack.c.h.b16 %v57
    %v148 = vunpack.c.l.b16 %v58
    %v149 = vunpack.c.h.b16 %v58
    %v150 = vunpack.c.l.b16 %v59
    %v151 = vunpack.c.h.b16 %v59
    %v152 = vunpack.c.l.b16 %v60
    %v153 = vunpack.c.h.b16 %v60
    %v154 = vunpack.c.l.b16 %v61
    %v155 = vunpack.c.h.b16 %v61
    %v156 = vunpack.c.l.b16 %v62
    %v157 = vunpack.c.h.b16 %v62
    %v158 = vunpack.c.l.b16 %v63
    %v159 = vunpack.c.h.b16 %v63
    %v160 = vunpack.c.l.b16 %v64
    %v161 = vunpack.c.h.b16 %v64
    %v162 = vunpack.c.l.b16 %v65
    %v163 = vunpack.c.h.b16 %v65
    %v164 = vunpack.c.l.b16 %v66
    %v165 = vunpack.c.h.b16 %v66
    %v166 = vunpack.c.l.b16 %v67
    %v167 = vunpack.c.h.b16 %v67
    %v168 = vunpack.c.l.b16 %v68
    %v169 = vunpack.c.h.b16 %v68
    %v170 = vunpack.c.l.b16 %v69
    %v171 = vunpack.c.h.b16 %v69
    %v172 = vunpack.c.l.b16 %v70
    %v173 = vunpack.c.h.b16 %v70
    %v174 = vunpack.c.l.b16 %v71
    %v175 = vunpack.c.h.b16 %v71
    %v176 = vunpack.c.l.b16 %v72
    %v177 = vunpack.c.h.b16 %v72
    %v178 = vunpack.c.l.b16 %v73
    %v179 = vunpack.c.h.b16 %v73
    %v180 = vunpack.c.l.b16 %v74
    %v181 = vunpack.c.h.b16 %v74
    %v182 = vpack.c.b16 %v120, %v118
    %v183 = vpack.c.b16 %v121, %v119
    %v184 = vpack.c.b16 %v124, %v122
    %v185 = vpack.c.b16 %v125, %v123
    %v186 = vpack.c.b16 %v128, %v126
    %v187 = vpack.c.b16 %v129, %v127
    %v188 = vpack.c.b16 %v132, %v130
    %v189 = vpack.c.b16 %v133, %v131
    %v190 = vpack.c.b16 %v136, %v134
    %v191 = vpack.c.b16 %v137, %v135
    %v192 = vpack.c.b16 %v140, %v138
    %v193 = vpack.c.b16 %v141, %v139
    %v194 = vpack.c.b16 %v144, %v142
    %v195 = vpack.c.b16 %v145, %v143
    %v196 = vpack.c.b16 %v148, %v146
    %v197 = vpack.c.b16 %v149, %v147
    %v198 = vpack.c.b16 %v152, %v150
    %v199 = vpack.c.b16 %v153, %v151
    %v200 = vpack.c.b16 %v156, %v154
    %v201 = vpack.c.b16 %v157, %v155
    %v202 = vpack.c.b16 %v160, %v158
    %v203 = vpack.c.b16 %v161, %v159
    %v204 = vpack.c.b16 %v164, %v162
    %v205 = vpack.c.b16 %v165, %v163
    %v206 = vpack.c.b16 %v168, %v166
    %v207 = vpack.c.b16 %v169, %v167
    %v208 = vpack.c.b16 %v172, %v170
    %v209 = vpack.c.b16 %v173, %v171
    %v210 = vpack.c.b16 %v176, %v174
    %v211 = vpack.c.b16 %v177, %v175
    %v212 = vpack.c.b16 %v180, %v178
    %v213 = vpack.c.b16 %v181, %v179
    %246 = vmatprep.subr.bf16.mxu0 %v197
    %247 = vmatpush1.bf16.msra.mxu0 %v196
    %248 = vmatprep.subr.bf16.mxu0 %v195
    %249 = vmatpush1.bf16.msra.mxu0 %v194
    %250 = vmatprep.subr.bf16.mxu0 %v193
    %251 = vmatpush1.bf16.msra.mxu0 %v192
    %252 = vmatprep.subr.bf16.mxu0 %v191
    %253 = vmatpush1.bf16.msra.mxu0 %v190
    %254 = vmatprep.subr.bf16.mxu0 %v189
    %255 = vmatpush1.bf16.msra.mxu0 %v188
    %256 = vmatprep.subr.bf16.mxu0 %v187
    %257 = vmatpush1.bf16.msra.mxu0 %v186
    %258 = vmatprep.subr.bf16.mxu0 %v185
    %259 = vmatpush1.bf16.msra.mxu0 %v184
    %260 = vmatprep.subr.bf16.mxu0 %v183
    %261 = vmatpush1.bf16.msra.mxu0 %v182
    %262 = vmatprep.subr.bf16.mxu0 %v213
    %263 = vmatpush2.bf16.msra.mxu0 %v212
    %264 = vmatprep.subr.bf16.mxu0 %v211
    %265 = vmatpush2.bf16.msra.mxu0 %v210
    %266 = vmatprep.subr.bf16.mxu0 %v209
    %267 = vmatpush2.bf16.msra.mxu0 %v208
    %268 = vmatprep.subr.bf16.mxu0 %v207
    %269 = vmatpush2.bf16.msra.mxu0 %v206
    %270 = vmatprep.subr.bf16.mxu0 %v205
    %271 = vmatpush2.bf16.msra.mxu0 %v204
    %272 = vmatprep.subr.bf16.mxu0 %v203
    %273 = vmatpush2.bf16.msra.mxu0 %v202
    %274 = vmatprep.subr.bf16.mxu0 %v201
    %275 = vmatpush2.bf16.msra.mxu0 %v200
    %276 = vmatprep.subr.bf16.mxu0 %v199
    %277 = vmatpush2.bf16.msra.mxu0 %v198
    %278 = vmatprep.mubr.bf16.mxu0 %v83
    %279 = vmatmul.mubr.bf16.gmra.mxu0 %v82
    %v280 = vpop.f32.mrf.mxu0
    %v281 = vadd.f32 0.0, %v280
    %v282 = vpop.f32.mrf.mxu0
    %v283 = vadd.f32 0.0, %v282
    %v284 = vpop.f32.mrf.mxu0
    %v285 = vpop.f32.mrf.mxu0
    %286 = vdwg.mxu0
    %v287 = vld [vmem:[%s2] sm:$0xf]
    %v288 = vld [vmem:[%s2 + $0x4] sm:$0xf]
    %v289 = vpack.c.bf16 %v281, %v281
    %v290 = vpack.c.bf16 %v283, %v283
    %v291 = vld [vmem:[%s6] sm:$0xff]
    %v292 = vld [vmem:[%s6 + $0x8] sm:$0xff]
    %294 = vset.pattern.permute.xlu0 0
    %295 = vperm.xlu0 %294, %v291
    %v296 = vpop.permute.xlu0 %295
    %299 = vset.pattern.permute.xlu0 0
    %300 = vperm.xlu0 %299, %v292
    %v301 = vpop.permute.xlu0 %300
    %v305 = vunpack.c.l.b16 %v287
    %v306 = vunpack.c.l.b16 %v288
    %v307 = vpack.c.b16 %v306, %v305
    %vm308 = vcmask 31744
    %v310 = vsel %vm308, %v307, 0
    %vm312 = vcmask 1041408
    %v314 = vsel %vm312, %v289, 0
    %v317 = vsel %vm312, %v290, 0
    %319 = vmatprep.subr.bf16.mxu0 0
    %320 = vmatpush1.bf16.msra.mxu0 0
    %321 = vmatprep.subr.bf16.mxu0 0
    %322 = vmatpush1.bf16.msra.mxu0 0
    %323 = vmatprep.subr.bf16.mxu0 0
    %324 = vmatpush1.bf16.msra.mxu0 0
    %325 = vmatprep.subr.bf16.mxu0 0
    %326 = vmatpush1.bf16.msra.mxu0 0
    %327 = vmatprep.subr.bf16.mxu0 0
    %328 = vmatpush1.bf16.msra.mxu0 0
    %329 = vmatprep.subr.bf16.mxu0 0
    %330 = vmatpush1.bf16.msra.mxu0 0
    %331 = vmatprep.subr.bf16.mxu0 0
    %332 = vmatpush1.bf16.msra.mxu0 0
    %333 = vmatprep.subr.bf16.mxu0 %v317
    %334 = vmatpush1.bf16.msra.mxu0 %v314
    %335 = vmatprep.subr.bf16.mxu0 0
    %336 = vmatpush2.bf16.msra.mxu0 0
    %337 = vmatprep.subr.bf16.mxu0 0
    %338 = vmatpush2.bf16.msra.mxu0 0
    %339 = vmatprep.subr.bf16.mxu0 0
    %340 = vmatpush2.bf16.msra.mxu0 0
    %341 = vmatprep.subr.bf16.mxu0 0
    %342 = vmatpush2.bf16.msra.mxu0 0
    %343 = vmatprep.subr.bf16.mxu0 0
    %344 = vmatpush2.bf16.msra.mxu0 0
    %345 = vmatprep.subr.bf16.mxu0 0
    %346 = vmatpush2.bf16.msra.mxu0 0
    %347 = vmatprep.subr.bf16.mxu0 0
    %348 = vmatpush2.bf16.msra.mxu0 0
    %349 = vmatprep.subr.bf16.mxu0 0
    %350 = vmatpush2.bf16.msra.mxu0 0
    %351 = vmatprep.mubr.bf16.mxu0 0
    %352 = vmatmul.mubr.bf16.gmra.mxu0 %v310
    %v353 = vpop.f32.mrf.mxu0
    %v354 = vadd.f32 %v296, %v353
    %v355 = vpop.f32.mrf.mxu0
    %v356 = vadd.f32 %v296, %v355
    %v357 = vpop.f32.mrf.mxu0
    %v358 = vadd.f32 %v301, %v357
    %v359 = vpop.f32.mrf.mxu0
    %v360 = vadd.f32 %v301, %v359
    %361 = vdwg.mxu0
    %v362 = vmax.f32 %v354, 0.0
    %v363 = vmax.f32 %v356, 0.0
    %v364 = vmax.f32 %v358, 0.0
    %v365 = vmax.f32 %v360, 0.0
    %v366 = vld [vmem:[%s3] sm:$0xf]
    %v367 = vpack.c.bf16 %v364, %v362
    %v368 = vpack.c.bf16 %v365, %v363
    %v369 = vld [vmem:[%s6 + $0x10] sm:$0xff]
    %371 = vset.pattern.permute.xlu0 0
    %372 = vperm.xlu0 %371, %v369
    %v373 = vpop.permute.xlu0 %372
    %vm375 = vcmask 130048
    %v377 = vsel %vm375, %v366, 0
    %379 = vmatprep.subr.bf16.mxu0 0
    %380 = vmatpush1.bf16.msra.mxu0 0
    %381 = vmatprep.subr.bf16.mxu0 0
    %382 = vmatpush1.bf16.msra.mxu0 0
    %383 = vmatprep.subr.bf16.mxu0 0
    %384 = vmatpush1.bf16.msra.mxu0 0
    %385 = vmatprep.subr.bf16.mxu0 0
    %386 = vmatpush1.bf16.msra.mxu0 0
    %387 = vmatprep.subr.bf16.mxu0 0
    %388 = vmatpush1.bf16.msra.mxu0 0
    %389 = vmatprep.subr.bf16.mxu0 0
    %390 = vmatpush1.bf16.msra.mxu0 0
    %391 = vmatprep.subr.bf16.mxu0 0
    %392 = vmatpush1.bf16.msra.mxu0 0
    %393 = vmatprep.subr.bf16.mxu0 %v368
    %394 = vmatpush1.bf16.msra.mxu0 %v367
    %395 = vmatprep.subr.bf16.mxu0 0
    %396 = vmatpush2.bf16.msra.mxu0 0
    %397 = vmatprep.subr.bf16.mxu0 0
    %398 = vmatpush2.bf16.msra.mxu0 0
    %399 = vmatprep.subr.bf16.mxu0 0
    %400 = vmatpush2.bf16.msra.mxu0 0
    %401 = vmatprep.subr.bf16.mxu0 0
    %402 = vmatpush2.bf16.msra.mxu0 0
    %403 = vmatprep.subr.bf16.mxu0 0
    %404 = vmatpush2.bf16.msra.mxu0 0
    %405 = vmatprep.subr.bf16.mxu0 0
    %406 = vmatpush2.bf16.msra.mxu0 0
    %407 = vmatprep.subr.bf16.mxu0 0
    %408 = vmatpush2.bf16.msra.mxu0 0
    %409 = vmatprep.subr.bf16.mxu0 0
    %410 = vmatpush2.bf16.msra.mxu0 0
    %411 = vmatprep.mubr.bf16.mxu0 0
    %412 = vmatmul.mubr.bf16.gmra.mxu0 %v377
    %v413 = vpop.f32.mrf.mxu0
    %v414 = vadd.f32 %v373, %v413
    %v415 = vpop.f32.mrf.mxu0
    %v416 = vadd.f32 %v373, %v415
    %v417 = vpop.f32.mrf.mxu0
    %v418 = vpop.f32.mrf.mxu0
    %419 = vdwg.mxu0
    %v420 = vpack.c.bf16 %v414, %v414
    %v421 = vpack.c.bf16 %v416, %v416
    %422 = vmatprep.subr.bf16.mxu0 %v197
    %423 = vmatpush1.bf16.msra.mxu0 %v196
    %424 = vmatprep.subr.bf16.mxu0 %v195
    %425 = vmatpush1.bf16.msra.mxu0 %v194
    %426 = vmatprep.subr.bf16.mxu0 %v193
    %427 = vmatpush1.bf16.msra.mxu0 %v192
    %428 = vmatprep.subr.bf16.mxu0 %v191
    %429 = vmatpush1.bf16.msra.mxu0 %v190
    %430 = vmatprep.subr.bf16.mxu0 %v189
    %431 = vmatpush1.bf16.msra.mxu0 %v188
    %432 = vmatprep.subr.bf16.mxu0 %v187
    %433 = vmatpush1.bf16.msra.mxu0 %v186
    %434 = vmatprep.subr.bf16.mxu0 %v185
    %435 = vmatpush1.bf16.msra.mxu0 %v184
    %436 = vmatprep.subr.bf16.mxu0 %v183
    %437 = vmatpush1.bf16.msra.mxu0 %v182
    %438 = vmatprep.subr.bf16.mxu0 %v213
    %439 = vmatpush2.bf16.msra.mxu0 %v212
    %440 = vmatprep.subr.bf16.mxu0 %v211
    %441 = vmatpush2.bf16.msra.mxu0 %v210
    %442 = vmatprep.subr.bf16.mxu0 %v209
    %443 = vmatpush2.bf16.msra.mxu0 %v208
    %444 = vmatprep.subr.bf16.mxu0 %v207
    %445 = vmatpush2.bf16.msra.mxu0 %v206
    %446 = vmatprep.subr.bf16.mxu0 %v205
    %447 = vmatpush2.bf16.msra.mxu0 %v204
    %448 = vmatprep.subr.bf16.mxu0 %v203
    %449 = vmatpush2.bf16.msra.mxu0 %v202
    %450 = vmatprep.subr.bf16.mxu0 %v201
    %451 = vmatpush2.bf16.msra.mxu0 %v200
    %452 = vmatprep.subr.bf16.mxu0 %v199
    %453 = vmatpush2.bf16.msra.mxu0 %v198
    %454 = vmatprep.mubr.bf16.mxu0 %v421
    %455 = vmatmul.mubr.bf16.gmra.mxu0 %v420
    %v456 = vpop.f32.mrf.mxu0
    %v457 = vadd.f32 0.0, %v456
    %v458 = vpop.f32.mrf.mxu0
    %v459 = vadd.f32 0.0, %v458
    %v460 = vpop.f32.mrf.mxu0
    %v461 = vpop.f32.mrf.mxu0
    %462 = vdwg.mxu0
    %v463 = vld [vmem:[%s4] sm:$0xf]
    %v464 = vld [vmem:[%s4 + $0x4] sm:$0xf]
    %v465 = vld [vmem:[%s4 + $0x8] sm:$0xf]
    %v466 = vld [vmem:[%s4 + $0xc] sm:$0xf]
    %v467 = vpack.c.bf16 %v457, %v457
    %v468 = vpack.c.bf16 %v459, %v459
    %v469 = vld [vmem:[%s6 + $0x18] sm:$0xff]
    %v470 = vld [vmem:[%s6 + $0x20] sm:$0xff]
    %v471 = vld [vmem:[%s6 + $0x28] sm:$0xff]
    %v472 = vld [vmem:[%s6 + $0x30] sm:$0xff]
    %474 = vset.pattern.permute.xlu0 0
    %475 = vperm.xlu0 %474, %v469
    %v476 = vpop.permute.xlu0 %475
    %479 = vset.pattern.permute.xlu0 0
    %480 = vperm.xlu0 %479, %v470
    %v481 = vpop.permute.xlu0 %480
    %484 = vset.pattern.permute.xlu0 0
    %485 = vperm.xlu0 %484, %v471
    %v486 = vpop.permute.xlu0 %485
    %489 = vset.pattern.permute.xlu0 0
    %490 = vperm.xlu0 %489, %v472
    %v491 = vpop.permute.xlu0 %490
    %v497 = vunpack.c.l.b16 %v463
    %v498 = vunpack.c.l.b16 %v464
    %v499 = vunpack.c.l.b16 %v465
    %v500 = vunpack.c.l.b16 %v466
    %v501 = vpack.c.b16 %v498, %v497
    %v502 = vpack.c.b16 %v500, %v499
    %vm503 = vcmask 64512
    %v505 = vsel %vm503, %v501, 0
    %v508 = vsel %vm503, %v502, 0
    %vm510 = vcmask 1043456
    %v512 = vsel %vm510, %v467, 0
    %v515 = vsel %vm510, %v468, 0
    %517 = vmatprep.subr.bf16.mxu0 0
    %518 = vmatpush1.bf16.msra.mxu0 0
    %519 = vmatprep.subr.bf16.mxu0 0
    %520 = vmatpush1.bf16.msra.mxu0 0
    %521 = vmatprep.subr.bf16.mxu0 0
    %522 = vmatpush1.bf16.msra.mxu0 0
    %523 = vmatprep.subr.bf16.mxu0 0
    %524 = vmatpush1.bf16.msra.mxu0 0
    %525 = vmatprep.subr.bf16.mxu0 0
    %526 = vmatpush1.bf16.msra.mxu0 0
    %527 = vmatprep.subr.bf16.mxu0 0
    %528 = vmatpush1.bf16.msra.mxu0 0
    %529 = vmatprep.subr.bf16.mxu0 0
    %530 = vmatpush1.bf16.msra.mxu0 0
    %531 = vmatprep.subr.bf16.mxu0 %v515
    %532 = vmatpush1.bf16.msra.mxu0 %v512
    %533 = vmatprep.subr.bf16.mxu0 0
    %534 = vmatpush2.bf16.msra.mxu0 0
    %535 = vmatprep.subr.bf16.mxu0 0
    %536 = vmatpush2.bf16.msra.mxu0 0
    %537 = vmatprep.subr.bf16.mxu0 0
    %538 = vmatpush2.bf16.msra.mxu0 0
    %539 = vmatprep.subr.bf16.mxu0 0
    %540 = vmatpush2.bf16.msra.mxu0 0
    %541 = vmatprep.subr.bf16.mxu0 0
    %542 = vmatpush2.bf16.msra.mxu0 0
    %543 = vmatprep.subr.bf16.mxu0 0
    %544 = vmatpush2.bf16.msra.mxu0 0
    %545 = vmatprep.subr.bf16.mxu0 0
    %546 = vmatpush2.bf16.msra.mxu0 0
    %547 = vmatprep.subr.bf16.mxu0 0
    %548 = vmatpush2.bf16.msra.mxu0 0
    %549 = vmatprep.mubr.bf16.mxu0 0
    %550 = vmatmul.mubr.bf16.gmra.mxu0 %v505
    %v551 = vpop.f32.mrf.mxu0
    %v552 = vadd.f32 %v476, %v551
    %v553 = vpop.f32.mrf.mxu0
    %v554 = vadd.f32 %v476, %v553
    %v555 = vpop.f32.mrf.mxu0
    %v556 = vadd.f32 %v481, %v555
    %v557 = vpop.f32.mrf.mxu0
    %v558 = vadd.f32 %v481, %v557
    %559 = vmatprep.mubr.bf16.mxu0 0
    %560 = vmatmul.mubr.bf16.gmra.mxu0 %v508
    %v561 = vpop.f32.mrf.mxu0
    %v562 = vadd.f32 %v486, %v561
    %v563 = vpop.f32.mrf.mxu0
    %v564 = vadd.f32 %v486, %v563
    %v565 = vpop.f32.mrf.mxu0
    %v566 = vadd.f32 %v491, %v565
    %v567 = vpop.f32.mrf.mxu0
    %v568 = vadd.f32 %v491, %v567
    %569 = vdwg.mxu0
    %v570 = vmax.f32 %v552, 0.0
    %v571 = vmax.f32 %v554, 0.0
    %v572 = vmax.f32 %v556, 0.0
    %v573 = vmax.f32 %v558, 0.0
    %v574 = vmax.f32 %v562, 0.0
    %v575 = vmax.f32 %v564, 0.0
    %v576 = vmax.f32 %v566, 0.0
    %v577 = vmax.f32 %v568, 0.0
    %v578 = vld [vmem:[%s5] sm:$0xf]
    %v579 = vpack.c.bf16 %v572, %v570
    %v580 = vpack.c.bf16 %v573, %v571
    %v581 = vpack.c.bf16 %v576, %v574
    %v582 = vpack.c.bf16 %v577, %v575
    %v583 = vld [vmem:[%s6 + $0x38] sm:$0xff]
    %585 = vset.pattern.permute.xlu0 0
    %586 = vperm.xlu0 %585, %v583
    %v587 = vpop.permute.xlu0 %586
    %vm589 = vcmask 261120
    %v591 = vsel %vm589, %v578, 0
    %593 = vmatprep.subr.bf16.mxu0 0
    %594 = vmatpush1.bf16.msra.mxu0 0
    %595 = vmatprep.subr.bf16.mxu0 0
    %596 = vmatpush1.bf16.msra.mxu0 0
    %597 = vmatprep.subr.bf16.mxu0 0
    %598 = vmatpush1.bf16.msra.mxu0 0
    %599 = vmatprep.subr.bf16.mxu0 0
    %600 = vmatpush1.bf16.msra.mxu0 0
    %601 = vmatprep.subr.bf16.mxu0 0
    %602 = vmatpush1.bf16.msra.mxu0 0
    %603 = vmatprep.subr.bf16.mxu0 0
    %604 = vmatpush1.bf16.msra.mxu0 0
    %605 = vmatprep.subr.bf16.mxu0 %v582
    %606 = vmatpush1.bf16.msra.mxu0 %v581
    %607 = vmatprep.subr.bf16.mxu0 %v580
    %608 = vmatpush1.bf16.msra.mxu0 %v579
    %609 = vmatprep.subr.bf16.mxu0 0
    %610 = vmatpush2.bf16.msra.mxu0 0
    %611 = vmatprep.subr.bf16.mxu0 0
    %612 = vmatpush2.bf16.msra.mxu0 0
    %613 = vmatprep.subr.bf16.mxu0 0
    %614 = vmatpush2.bf16.msra.mxu0 0
    %615 = vmatprep.subr.bf16.mxu0 0
    %616 = vmatpush2.bf16.msra.mxu0 0
    %617 = vmatprep.subr.bf16.mxu0 0
    %618 = vmatpush2.bf16.msra.mxu0 0
    %619 = vmatprep.subr.bf16.mxu0 0
    %620 = vmatpush2.bf16.msra.mxu0 0
    %621 = vmatprep.subr.bf16.mxu0 0
    %622 = vmatpush2.bf16.msra.mxu0 0
    %623 = vmatprep.subr.bf16.mxu0 0
    %624 = vmatpush2.bf16.msra.mxu0 0
    %625 = vmatprep.mubr.bf16.mxu0 0
    %626 = vmatmul.mubr.bf16.gmra.mxu0 %v591
    %v627 = vpop.f32.mrf.mxu0
    %v628 = vadd.f32 %v587, %v627
    %v629 = vpop.f32.mrf.mxu0
    %v630 = vadd.f32 %v587, %v629
    %v631 = vpop.f32.mrf.mxu0
    %v632 = vpop.f32.mrf.mxu0
    %633 = vdwg.mxu0
    %v634 = vmax.f32 %v628, 0.0
    %v635 = vmax.f32 %v630, 0.0
    %636 = vst [vmem:[#allocation5] sm:$0xff] %v634
    %637 = vst [vmem:[#allocation5 + $0x8] sm:$0xff] %v635
    // Predicated region
    $region34: #{tpu_custom_call.1} parent=1 // pred_check
      _
    $region35: #{tpu_custom_call.1} parent=1 // pred_check_branch
      %639 = sbr.rel (0) target = $region37
    $region36: #{tpu_custom_call.1} parent=1 // pred_region
      %s641 = ssub.s32 256, 256
      %642 = vsyncadd [#allocation4], %s641
      %s644 = sshll.u32 [#allocation5], 4
      %s645 = int_to_ptr.vmem [resolvable:$true] %s644
      %647 = dma.vmem_to_hbm [thread:$0]  %s645, 256, %s7, [#allocation4]
    $region37: #{tpu_custom_call.1} parent=1 // pred_fallthru
      _
    // Predicated region
    $region38: #{tpu_custom_call.1} parent=1 // pred_check
      _
    $region39: #{tpu_custom_call.1} parent=1 // pred_check_branch
      %649 = sbr.rel (0) target = $region41
    $region40: #{tpu_custom_call.1} parent=1 // pred_region
      %650 = dma.done [#allocation4], 256
    $region41: #{tpu_custom_call.1} parent=1 // pred_fallthru
      _
    %651 = vsyncpa [#allocation3], 1
    %652 = vsyncpa [#allocation4], 1

// kernel: tpu_custom_call.1
$region0: #{tpu_custom_call.1}
  #allocation0 [shape = 'u32[]', space=smem, size = 0x4, offset = 0x4, fixed_abs, tag = 'smem constant byte address 0x4 - core index']
  #allocation1 [shape = 'u32[144,128]{1,0:T(1,128)}', space=vmem, size = 0x12000, scoped, tag = 'internal scratch']
  %s0 = inlined_call_operand.vmem [shape: bf16[1,4,256], index: 0, kind: input, shape index: {}]
  %s1 = inlined_call_operand.hbm [shape: bf16[256,256], index: 1, kind: input, shape index: {}]
  %s2 = inlined_call_operand.vmem [shape: bf16[16,4], index: 2, kind: input, shape index: {}]
  %s3 = inlined_call_operand.vmem [shape: bf16[8,16], index: 3, kind: input, shape index: {}]
  %s4 = inlined_call_operand.vmem [shape: bf16[32,8], index: 4, kind: input, shape index: {}]
  %s5 = inlined_call_operand.vmem [shape: bf16[8,32], index: 5, kind: input, shape index: {}]
  %s6 = inlined_call_operand.vmem [shape: f32[64,1], index: 6, kind: input, shape index: {}]
  %s7 = inlined_call_operand.hbm [shape: f32[1,8,256], index: 7, kind: output, shape index: {}]
  %s8 = sld [smem:[#allocation0]]
  $region42: #{tpu_custom_call.1} parent=0
    _
  %s10 = ssub.s32 1, %s8
  %s11 = scalar_select 0, %s10, %s8
  $region1: #{tpu_custom_call.1} parent=0
    #allocation2 [shape = 'u8[131072]{0}', space=vmem, size = 0x20000, scoped, tag = 'input window, operand 1, single buffered']
    #allocation3 [shape = 's32[1]{0}', space=sflag, size = 0x4, scoped, tag = 'scoped memory for tpu_custom_call.1']
    #allocation4 [shape = 's32[1]{0}', space=sflag, size = 0x4, scoped, tag = 'scoped memory for tpu_custom_call.1']
    #allocation5 [shape = 'u8[8192]{0}', space=vmem, size = 0x2000, scoped, tag = 'output window, operand 0, single buffered']
    %12 = vsyncpa [#allocation3], 0
    %13 = vsyncpa [#allocation4], 0
    // Predicated region
    $region2: #{tpu_custom_call.1} parent=1 // pred_check
      _
    $region3: #{tpu_custom_call.1} parent=1 // pred_check_branch
      %15 = sbr.rel (0) target = $region5
    $region4: #{tpu_custom_call.1} parent=1 // pred_region
      _
    $region5: #{tpu_custom_call.1} parent=1 // pred_fallthru
      _
    // Predicated region
    $region6: #{tpu_custom_call.1} parent=1 // pred_check
      _
    $region7: #{tpu_custom_call.1} parent=1 // pred_check_branch
      %17 = sbr.rel (0) target = $region9
    $region8: #{tpu_custom_call.1} parent=1 // pred_region
      %s19 = ssub.s32 4096, 4096
      %20 = vsyncadd [#allocation3], %s19
      %s21 = sshll.u32 [#allocation2], 4
      %s22 = int_to_ptr.vmem [resolvable:$true] %s21
      %27 = dma.hbm_to_vmem [thread:$0]  %s1, 4096, %s22, [#allocation3], 128, 128, 8
    $region9: #{tpu_custom_call.1} parent=1 // pred_fallthru
      _
    // Predicated region
    $region10: #{tpu_custom_call.1} parent=1 // pred_check
      _
    $region11: #{tpu_custom_call.1} parent=1 // pred_check_branch
      %29 = sbr.rel (0) target = $region13
    $region12: #{tpu_custom_call.1} parent=1 // pred_region
      _
    $region13: #{tpu_custom_call.1} parent=1 // pred_fallthru
      _
    // Predicated region
    $region14: #{tpu_custom_call.1} parent=1 // pred_check
      _
    $region15: #{tpu_custom_call.1} parent=1 // pred_check_branch
      %31 = sbr.rel (0) target = $region17
    $region16: #{tpu_custom_call.1} parent=1 // pred_region
      _
    $region17: #{tpu_custom_call.1} parent=1 // pred_fallthru
      _
    // Predicated region
    $region18: #{tpu_custom_call.1} parent=1 // pred_check
      _
    $region19: #{tpu_custom_call.1} parent=1 // pred_check_branch
      %33 = sbr.rel (0) target = $region21
    $region20: #{tpu_custom_call.1} parent=1 // pred_region
      _
    $region21: #{tpu_custom_call.1} parent=1 // pred_fallthru
      _
    // Predicated region
    $region22: #{tpu_custom_call.1} parent=1 // pred_check
      _
    $region23: #{tpu_custom_call.1} parent=1 // pred_check_branch
      %35 = sbr.rel (0) target = $region25
    $region24: #{tpu_custom_call.1} parent=1 // pred_region
      _
    $region25: #{tpu_custom_call.1} parent=1 // pred_fallthru
      _
    // Predicated region
    $region26: #{tpu_custom_call.1} parent=1 // pred_check
      _
    $region27: #{tpu_custom_call.1} parent=1 // pred_check_branch
      %37 = sbr.rel (0) target = $region29
    $region28: #{tpu_custom_call.1} parent=1 // pred_region
      _
    $region29: #{tpu_custom_call.1} parent=1 // pred_fallthru
      _
    // Predicated region
    $region30: #{tpu_custom_call.1} parent=1 // pred_check
      _
    $region31: #{tpu_custom_call.1} parent=1 // pred_check_branch
      %39 = sbr.rel (0) target = $region33
    $region32: #{tpu_custom_call.1} parent=1 // pred_region
      %40 = dma.done [#allocation3], 4096
    $region33: #{tpu_custom_call.1} parent=1 // pred_fallthru
      _
    %v42 = vld [vmem:[%s0] sm:$0xf]
    %v43 = vld [vmem:[#allocation2] sm:$0xff]
    %v44 = vld [vmem:[#allocation2 + $0x8] sm:$0xff]
    %v45 = vld [vmem:[#allocation2 + $0x10] sm:$0xff]
    %v46 = vld [vmem:[#allocation2 + $0x18] sm:$0xff]
    %v47 = vld [vmem:[#allocation2 + $0x20] sm:$0xff]
    %v48 = vld [vmem:[#allocation2 + $0x28] sm:$0xff]
    %v49 = vld [vmem:[#allocation2 + $0x30] sm:$0xff]
    %v50 = vld [vmem:[#allocation2 + $0x38] sm:$0xff]
    %v51 = vld [vmem:[#allocation2 + $0x40] sm:$0xff]
    %v52 = vld [vmem:[#allocation2 + $0x48] sm:$0xff]
    %v53 = vld [vmem:[#allocation2 + $0x50] sm:$0xff]
    %v54 = vld [vmem:[#allocation2 + $0x58] sm:$0xff]
    %v55 = vld [vmem:[#allocation2 + $0x60] sm:$0xff]
    %v56 = vld [vmem:[#allocation2 + $0x68] sm:$0xff]
    %v57 = vld [vmem:[#allocation2 + $0x70] sm:$0xff]
    %v58 = vld [vmem:[#allocation2 + $0x78] sm:$0xff]
    %v59 = vld [vmem:[#allocation2 + $0x80] sm:$0xff]
    %v60 = vld [vmem:[#allocation2 + $0x88] sm:$0xff]
    %v61 = vld [vmem:[#allocation2 + $0x90] sm:$0xff]
    %v62 = vld [vmem:[#allocation2 + $0x98] sm:$0xff]
    %v63 = vld [vmem:[#allocation2 + $0xa0] sm:$0xff]
    %v64 = vld [vmem:[#allocation2 + $0xa8] sm:$0xff]
    %v65 = vld [vmem:[#allocation2 + $0xb0] sm:$0xff]
    %v66 = vld [vmem:[#allocation2 + $0xb8] sm:$0xff]
    %v67 = vld [vmem:[#allocation2 + $0xc0] sm:$0xff]
    %v68 = vld [vmem:[#allocation2 + $0xc8] sm:$0xff]
    %v69 = vld [vmem:[#allocation2 + $0xd0] sm:$0xff]
    %v70 = vld [vmem:[#allocation2 + $0xd8] sm:$0xff]
    %v71 = vld [vmem:[#allocation2 + $0xe0] sm:$0xff]
    %v72 = vld [vmem:[#allocation2 + $0xe8] sm:$0xff]
    %v73 = vld [vmem:[#allocation2 + $0xf0] sm:$0xff]
    %v74 = vld [vmem:[#allocation2 + $0xf8] sm:$0xff]
    %v77 = vunpack.c.l.s4 1983009808
    %v78 = vunpack.c.0.s8 %v77
    %v79 = vlaneseq
    %v80 = vshrl.u32 %v79, 7
    %v81 = vsub.s32 %v78, %v80
    %v82 = vrot.slane %v42, %v81
    %v83 = vcombine.high %v82, %v82
    %v118 = vunpack.c.l.b16 %v43
    %v119 = vunpack.c.h.b16 %v43
    %v120 = vunpack.c.l.b16 %v44
    %v121 = vunpack.c.h.b16 %v44
    %v122 = vunpack.c.l.b16 %v45
    %v123 = vunpack.c.h.b16 %v45
    %v124 = vunpack.c.l.b16 %v46
    %v125 = vunpack.c.h.b16 %v46
    %v126 = vunpack.c.l.b16 %v47
    %v127 = vunpack.c.h.b16 %v47
    %v128 = vunpack.c.l.b16 %v48
    %v129 = vunpack.c.h.b16 %v48
    %v130 = vunpack.c.l.b16 %v49
    %v131 = vunpack.c.h.b16 %v49
    %v132 = vunpack.c.l.b16 %v50
    %v133 = vunpack.c.h.b16 %v50
    %v134 = vunpack.c.l.b16 %v51
    %v135 = vunpack.c.h.b16 %v51
    %v136 = vunpack.c.l.b16 %v52
    %v137 = vunpack.c.h.b16 %v52
    %v138 = vunpack.c.l.b16 %v53
    %v139 = vunpack.c.h.b16 %v53
    %v140 = vunpack.c.l.b16 %v54
    %v141 = vunpack.c.h.b16 %v54
    %v142 = vunpack.c.l.b16 %v55
    %v143 = vunpack.c.h.b16 %v55
    %v144 = vunpack.c.l.b16 %v56
    %v145 = vunpack.c.h.b16 %v56
    %v146 = vunpack.c.l.b16 %v57
    %v147 = vunpack.c.h.b16 %v57
    %v148 = vunpack.c.l.b16 %v58
    %v149 = vunpack.c.h.b16 %v58
    %v150 = vunpack.c.l.b16 %v59
    %v151 = vunpack.c.h.b16 %v59
    %v152 = vunpack.c.l.b16 %v60
    %v153 = vunpack.c.h.b16 %v60
    %v154 = vunpack.c.l.b16 %v61
    %v155 = vunpack.c.h.b16 %v61
    %v156 = vunpack.c.l.b16 %v62
    %v157 = vunpack.c.h.b16 %v62
    %v158 = vunpack.c.l.b16 %v63
    %v159 = vunpack.c.h.b16 %v63
    %v160 = vunpack.c.l.b16 %v64
    %v161 = vunpack.c.h.b16 %v64
    %v162 = vunpack.c.l.b16 %v65
    %v163 = vunpack.c.h.b16 %v65
    %v164 = vunpack.c.l.b16 %v66
    %v165 = vunpack.c.h.b16 %v66
    %v166 = vunpack.c.l.b16 %v67
    %v167 = vunpack.c.h.b16 %v67
    %v168 = vunpack.c.l.b16 %v68
    %v169 = vunpack.c.h.b16 %v68
    %v170 = vunpack.c.l.b16 %v69
    %v171 = vunpack.c.h.b16 %v69
    %v172 = vunpack.c.l.b16 %v70
    %v173 = vunpack.c.h.b16 %v70
    %v174 = vunpack.c.l.b16 %v71
    %v175 = vunpack.c.h.b16 %v71
    %v176 = vunpack.c.l.b16 %v72
    %v177 = vunpack.c.h.b16 %v72
    %v178 = vunpack.c.l.b16 %v73
    %v179 = vunpack.c.h.b16 %v73
    %v180 = vunpack.c.l.b16 %v74
    %v181 = vunpack.c.h.b16 %v74
    %v182 = vpack.c.b16 %v120, %v118
    %v183 = vpack.c.b16 %v121, %v119
    %v184 = vpack.c.b16 %v124, %v122
    %v185 = vpack.c.b16 %v125, %v123
    %v186 = vpack.c.b16 %v128, %v126
    %v187 = vpack.c.b16 %v129, %v127
    %v188 = vpack.c.b16 %v132, %v130
    %v189 = vpack.c.b16 %v133, %v131
    %v190 = vpack.c.b16 %v136, %v134
    %v191 = vpack.c.b16 %v137, %v135
    %v192 = vpack.c.b16 %v140, %v138
    %v193 = vpack.c.b16 %v141, %v139
    %v194 = vpack.c.b16 %v144, %v142
    %v195 = vpack.c.b16 %v145, %v143
    %v196 = vpack.c.b16 %v148, %v146
    %v197 = vpack.c.b16 %v149, %v147
    %v198 = vpack.c.b16 %v152, %v150
    %v199 = vpack.c.b16 %v153, %v151
    %v200 = vpack.c.b16 %v156, %v154
    %v201 = vpack.c.b16 %v157, %v155
    %v202 = vpack.c.b16 %v160, %v158
    %v203 = vpack.c.b16 %v161, %v159
    %v204 = vpack.c.b16 %v164, %v162
    %v205 = vpack.c.b16 %v165, %v163
    %v206 = vpack.c.b16 %v168, %v166
    %v207 = vpack.c.b16 %v169, %v167
    %v208 = vpack.c.b16 %v172, %v170
    %v209 = vpack.c.b16 %v173, %v171
    %v210 = vpack.c.b16 %v176, %v174
    %v211 = vpack.c.b16 %v177, %v175
    %v212 = vpack.c.b16 %v180, %v178
    %v213 = vpack.c.b16 %v181, %v179
    %246 = vmatprep.subr.bf16.mxu0 %v197
    %247 = vmatpush1.bf16.msra.mxu0 %v196
    %248 = vmatprep.subr.bf16.mxu0 %v195
    %249 = vmatpush1.bf16.msra.mxu0 %v194
    %250 = vmatprep.subr.bf16.mxu0 %v193
    %251 = vmatpush1.bf16.msra.mxu0 %v192
    %252 = vmatprep.subr.bf16.mxu0 %v191
    %253 = vmatpush1.bf16.msra.mxu0 %v190
    %254 = vmatprep.subr.bf16.mxu0 %v189
    %255 = vmatpush1.bf16.msra.mxu0 %v188
    %256 = vmatprep.subr.bf16.mxu0 %v187
    %257 = vmatpush1.bf16.msra.mxu0 %v186
    %258 = vmatprep.subr.bf16.mxu0 %v185
    %259 = vmatpush1.bf16.msra.mxu0 %v184
    %260 = vmatprep.subr.bf16.mxu0 %v183
    %261 = vmatpush1.bf16.msra.mxu0 %v182
    %262 = vmatprep.subr.bf16.mxu0 %v213
    %263 = vmatpush2.bf16.msra.mxu0 %v212
    %264 = vmatprep.subr.bf16.mxu0 %v211
    %265 = vmatpush2.bf16.msra.mxu0 %v210
    %266 = vmatprep.subr.bf16.mxu0 %v209
    %267 = vmatpush2.bf16.msra.mxu0 %v208
    %268 = vmatprep.subr.bf16.mxu0 %v207
    %269 = vmatpush2.bf16.msra.mxu0 %v206
    %270 = vmatprep.subr.bf16.mxu0 %v205
    %271 = vmatpush2.bf16.msra.mxu0 %v204
    %272 = vmatprep.subr.bf16.mxu0 %v203
    %273 = vmatpush2.bf16.msra.mxu0 %v202
    %274 = vmatprep.subr.bf16.mxu0 %v201
    %275 = vmatpush2.bf16.msra.mxu0 %v200
    %276 = vmatprep.subr.bf16.mxu0 %v199
    %277 = vmatpush2.bf16.msra.mxu0 %v198
    %278 = vmatprep.mubr.bf16.mxu0 %v83
    %279 = vmatmul.mubr.bf16.gmra.mxu0 %v82
    %v280 = vpop.f32.mrf.mxu0
    %v281 = vadd.f32 0.0, %v280
    %v282 = vpop.f32.mrf.mxu0
    %v283 = vadd.f32 0.0, %v282
    %v284 = vpop.f32.mrf.mxu0
    %v285 = vpop.f32.mrf.mxu0
    %286 = vdwg.mxu0
    %v287 = vld [vmem:[%s2] sm:$0xf]
    %v288 = vld [vmem:[%s2 + $0x4] sm:$0xf]
    %v289 = vpack.c.bf16 %v281, %v281
    %v290 = vpack.c.bf16 %v283, %v283
    %v291 = vld [vmem:[%s6] sm:$0xff]
    %v292 = vld [vmem:[%s6 + $0x8] sm:$0xff]
    %294 = vset.pattern.permute.xlu0 0
    %295 = vperm.xlu0 %294, %v291
    %v296 = vpop.permute.xlu0 %295
    %299 = vset.pattern.permute.xlu0 0
    %300 = vperm.xlu0 %299, %v292
    %v301 = vpop.permute.xlu0 %300
    %v305 = vunpack.c.l.b16 %v287
    %v306 = vunpack.c.l.b16 %v288
    %v307 = vpack.c.b16 %v306, %v305
    %vm308 = vcmask 31744
    %v310 = vsel %vm308, %v307, 0
    %vm312 = vcmask 1041408
    %v314 = vsel %vm312, %v289, 0
    %v317 = vsel %vm312, %v290, 0
    %319 = vmatprep.subr.bf16.mxu0 0
    %320 = vmatpush1.bf16.msra.mxu0 0
    %321 = vmatprep.subr.bf16.mxu0 0
    %322 = vmatpush1.bf16.msra.mxu0 0
    %323 = vmatprep.subr.bf16.mxu0 0
    %324 = vmatpush1.bf16.msra.mxu0 0
    %325 = vmatprep.subr.bf16.mxu0 0
    %326 = vmatpush1.bf16.msra.mxu0 0
    %327 = vmatprep.subr.bf16.mxu0 0
    %328 = vmatpush1.bf16.msra.mxu0 0
    %329 = vmatprep.subr.bf16.mxu0 0
    %330 = vmatpush1.bf16.msra.mxu0 0
    %331 = vmatprep.subr.bf16.mxu0 0
    %332 = vmatpush1.bf16.msra.mxu0 0
    %333 = vmatprep.subr.bf16.mxu0 %v317
    %334 = vmatpush1.bf16.msra.mxu0 %v314
    %335 = vmatprep.subr.bf16.mxu0 0
    %336 = vmatpush2.bf16.msra.mxu0 0
    %337 = vmatprep.subr.bf16.mxu0 0
    %338 = vmatpush2.bf16.msra.mxu0 0
    %339 = vmatprep.subr.bf16.mxu0 0
    %340 = vmatpush2.bf16.msra.mxu0 0
    %341 = vmatprep.subr.bf16.mxu0 0
    %342 = vmatpush2.bf16.msra.mxu0 0
    %343 = vmatprep.subr.bf16.mxu0 0
    %344 = vmatpush2.bf16.msra.mxu0 0
    %345 = vmatprep.subr.bf16.mxu0 0
    %346 = vmatpush2.bf16.msra.mxu0 0
    %347 = vmatprep.subr.bf16.mxu0 0
    %348 = vmatpush2.bf16.msra.mxu0 0
    %349 = vmatprep.subr.bf16.mxu0 0
    %350 = vmatpush2.bf16.msra.mxu0 0
    %351 = vmatprep.mubr.bf16.mxu0 0
    %352 = vmatmul.mubr.bf16.gmra.mxu0 %v310
    %v353 = vpop.f32.mrf.mxu0
    %v354 = vadd.f32 %v296, %v353
    %v355 = vpop.f32.mrf.mxu0
    %v356 = vadd.f32 %v296, %v355
    %v357 = vpop.f32.mrf.mxu0
    %v358 = vadd.f32 %v301, %v357
    %v359 = vpop.f32.mrf.mxu0
    %v360 = vadd.f32 %v301, %v359
    %361 = vdwg.mxu0
    %v362 = vmax.f32 %v354, 0.0
    %v363 = vmax.f32 %v356, 0.0
    %v364 = vmax.f32 %v358, 0.0
    %v365 = vmax.f32 %v360, 0.0
    %v366 = vld [vmem:[%s3] sm:$0xf]
    %v367 = vpack.c.bf16 %v364, %v362
    %v368 = vpack.c.bf16 %v365, %v363
    %v369 = vld [vmem:[%s6 + $0x10] sm:$0xff]
    %371 = vset.pattern.permute.xlu0 0
    %372 = vperm.xlu0 %371, %v369
    %v373 = vpop.permute.xlu0 %372
    %vm375 = vcmask 130048
    %v377 = vsel %vm375, %v366, 0
    %379 = vmatprep.subr.bf16.mxu0 0
    %380 = vmatpush1.bf16.msra.mxu0 0
    %381 = vmatprep.subr.bf16.mxu0 0
    %382 = vmatpush1.bf16.msra.mxu0 0
    %383 = vmatprep.subr.bf16.mxu0 0
    %384 = vmatpush1.bf16.msra.mxu0 0
    %385 = vmatprep.subr.bf16.mxu0 0
    %386 = vmatpush1.bf16.msra.mxu0 0
    %387 = vmatprep.subr.bf16.mxu0 0
    %388 = vmatpush1.bf16.msra.mxu0 0
    %389 = vmatprep.subr.bf16.mxu0 0
    %390 = vmatpush1.bf16.msra.mxu0 0
    %391 = vmatprep.subr.bf16.mxu0 0
    %392 = vmatpush1.bf16.msra.mxu0 0
    %393 = vmatprep.subr.bf16.mxu0 %v368
    %394 = vmatpush1.bf16.msra.mxu0 %v367
    %395 = vmatprep.subr.bf16.mxu0 0
    %396 = vmatpush2.bf16.msra.mxu0 0
    %397 = vmatprep.subr.bf16.mxu0 0
    %398 = vmatpush2.bf16.msra.mxu0 0
    %399 = vmatprep.subr.bf16.mxu0 0
    %400 = vmatpush2.bf16.msra.mxu0 0
    %401 = vmatprep.subr.bf16.mxu0 0
    %402 = vmatpush2.bf16.msra.mxu0 0
    %403 = vmatprep.subr.bf16.mxu0 0
    %404 = vmatpush2.bf16.msra.mxu0 0
    %405 = vmatprep.subr.bf16.mxu0 0
    %406 = vmatpush2.bf16.msra.mxu0 0
    %407 = vmatprep.subr.bf16.mxu0 0
    %408 = vmatpush2.bf16.msra.mxu0 0
    %409 = vmatprep.subr.bf16.mxu0 0
    %410 = vmatpush2.bf16.msra.mxu0 0
    %411 = vmatprep.mubr.bf16.mxu0 0
    %412 = vmatmul.mubr.bf16.gmra.mxu0 %v377
    %v413 = vpop.f32.mrf.mxu0
    %v414 = vadd.f32 %v373, %v413
    %v415 = vpop.f32.mrf.mxu0
    %v416 = vadd.f32 %v373, %v415
    %v417 = vpop.f32.mrf.mxu0
    %v418 = vpop.f32.mrf.mxu0
    %419 = vdwg.mxu0
    %v420 = vpack.c.bf16 %v414, %v414
    %v421 = vpack.c.bf16 %v416, %v416
    %422 = vmatprep.subr.bf16.mxu0 %v197
    %423 = vmatpush1.bf16.msra.mxu0 %v196
    %424 = vmatprep.subr.bf16.mxu0 %v195
    %425 = vmatpush1.bf16.msra.mxu0 %v194
    %426 = vmatprep.subr.bf16.mxu0 %v193
    %427 = vmatpush1.bf16.msra.mxu0 %v192
    %428 = vmatprep.subr.bf16.mxu0 %v191
    %429 = vmatpush1.bf16.msra.mxu0 %v190
    %430 = vmatprep.subr.bf16.mxu0 %v189
    %431 = vmatpush1.bf16.msra.mxu0 %v188
    %432 = vmatprep.subr.bf16.mxu0 %v187
    %433 = vmatpush1.bf16.msra.mxu0 %v186
    %434 = vmatprep.subr.bf16.mxu0 %v185
    %435 = vmatpush1.bf16.msra.mxu0 %v184
    %436 = vmatprep.subr.bf16.mxu0 %v183
    %437 = vmatpush1.bf16.msra.mxu0 %v182
    %438 = vmatprep.subr.bf16.mxu0 %v213
    %439 = vmatpush2.bf16.msra.mxu0 %v212
    %440 = vmatprep.subr.bf16.mxu0 %v211
    %441 = vmatpush2.bf16.msra.mxu0 %v210
    %442 = vmatprep.subr.bf16.mxu0 %v209
    %443 = vmatpush2.bf16.msra.mxu0 %v208
    %444 = vmatprep.subr.bf16.mxu0 %v207
    %445 = vmatpush2.bf16.msra.mxu0 %v206
    %446 = vmatprep.subr.bf16.mxu0 %v205
    %447 = vmatpush2.bf16.msra.mxu0 %v204
    %448 = vmatprep.subr.bf16.mxu0 %v203
    %449 = vmatpush2.bf16.msra.mxu0 %v202
    %450 = vmatprep.subr.bf16.mxu0 %v201
    %451 = vmatpush2.bf16.msra.mxu0 %v200
    %452 = vmatprep.subr.bf16.mxu0 %v199
    %453 = vmatpush2.bf16.msra.mxu0 %v198
    %454 = vmatprep.mubr.bf16.mxu0 %v421
    %455 = vmatmul.mubr.bf16.gmra.mxu0 %v420
    %v456 = vpop.f32.mrf.mxu0
    %v457 = vadd.f32 0.0, %v456
    %v458 = vpop.f32.mrf.mxu0
    %v459 = vadd.f32 0.0, %v458
    %v460 = vpop.f32.mrf.mxu0
    %v461 = vpop.f32.mrf.mxu0
    %462 = vdwg.mxu0
    %v463 = vld [vmem:[%s4] sm:$0xf]
    %v464 = vld [vmem:[%s4 + $0x4] sm:$0xf]
    %v465 = vld [vmem:[%s4 + $0x8] sm:$0xf]
    %v466 = vld [vmem:[%s4 + $0xc] sm:$0xf]
    %v467 = vpack.c.bf16 %v457, %v457
    %v468 = vpack.c.bf16 %v459, %v459
    %v469 = vld [vmem:[%s6 + $0x18] sm:$0xff]
    %v470 = vld [vmem:[%s6 + $0x20] sm:$0xff]
    %v471 = vld [vmem:[%s6 + $0x28] sm:$0xff]
    %v472 = vld [vmem:[%s6 + $0x30] sm:$0xff]
    %474 = vset.pattern.permute.xlu0 0
    %475 = vperm.xlu0 %474, %v469
    %v476 = vpop.permute.xlu0 %475
    %479 = vset.pattern.permute.xlu0 0
    %480 = vperm.xlu0 %479, %v470
    %v481 = vpop.permute.xlu0 %480
    %484 = vset.pattern.permute.xlu0 0
    %485 = vperm.xlu0 %484, %v471
    %v486 = vpop.permute.xlu0 %485
    %489 = vset.pattern.permute.xlu0 0
    %490 = vperm.xlu0 %489, %v472
    %v491 = vpop.permute.xlu0 %490
    %v497 = vunpack.c.l.b16 %v463
    %v498 = vunpack.c.l.b16 %v464
    %v499 = vunpack.c.l.b16 %v465
    %v500 = vunpack.c.l.b16 %v466
    %v501 = vpack.c.b16 %v498, %v497
    %v502 = vpack.c.b16 %v500, %v499
    %vm503 = vcmask 64512
    %v505 = vsel %vm503, %v501, 0
    %v508 = vsel %vm503, %v502, 0
    %vm510 = vcmask 1043456
    %v512 = vsel %vm510, %v467, 0
    %v515 = vsel %vm510, %v468, 0
    %517 = vmatprep.subr.bf16.mxu0 0
    %518 = vmatpush1.bf16.msra.mxu0 0
    %519 = vmatprep.subr.bf16.mxu0 0
    %520 = vmatpush1.bf16.msra.mxu0 0
    %521 = vmatprep.subr.bf16.mxu0 0
    %522 = vmatpush1.bf16.msra.mxu0 0
    %523 = vmatprep.subr.bf16.mxu0 0
    %524 = vmatpush1.bf16.msra.mxu0 0
    %525 = vmatprep.subr.bf16.mxu0 0
    %526 = vmatpush1.bf16.msra.mxu0 0
    %527 = vmatprep.subr.bf16.mxu0 0
    %528 = vmatpush1.bf16.msra.mxu0 0
    %529 = vmatprep.subr.bf16.mxu0 0
    %530 = vmatpush1.bf16.msra.mxu0 0
    %531 = vmatprep.subr.bf16.mxu0 %v515
    %532 = vmatpush1.bf16.msra.mxu0 %v512
    %533 = vmatprep.subr.bf16.mxu0 0
    %534 = vmatpush2.bf16.msra.mxu0 0
    %535 = vmatprep.subr.bf16.mxu0 0
    %536 = vmatpush2.bf16.msra.mxu0 0
    %537 = vmatprep.subr.bf16.mxu0 0
    %538 = vmatpush2.bf16.msra.mxu0 0
    %539 = vmatprep.subr.bf16.mxu0 0
    %540 = vmatpush2.bf16.msra.mxu0 0
    %541 = vmatprep.subr.bf16.mxu0 0
    %542 = vmatpush2.bf16.msra.mxu0 0
    %543 = vmatprep.subr.bf16.mxu0 0
    %544 = vmatpush2.bf16.msra.mxu0 0
    %545 = vmatprep.subr.bf16.mxu0 0
    %546 = vmatpush2.bf16.msra.mxu0 0
    %547 = vmatprep.subr.bf16.mxu0 0
    %548 = vmatpush2.bf16.msra.mxu0 0
    %549 = vmatprep.mubr.bf16.mxu0 0
    %550 = vmatmul.mubr.bf16.gmra.mxu0 %v505
    %v551 = vpop.f32.mrf.mxu0
    %v552 = vadd.f32 %v476, %v551
    %v553 = vpop.f32.mrf.mxu0
    %v554 = vadd.f32 %v476, %v553
    %v555 = vpop.f32.mrf.mxu0
    %v556 = vadd.f32 %v481, %v555
    %v557 = vpop.f32.mrf.mxu0
    %v558 = vadd.f32 %v481, %v557
    %559 = vmatprep.mubr.bf16.mxu0 0
    %560 = vmatmul.mubr.bf16.gmra.mxu0 %v508
    %v561 = vpop.f32.mrf.mxu0
    %v562 = vadd.f32 %v486, %v561
    %v563 = vpop.f32.mrf.mxu0
    %v564 = vadd.f32 %v486, %v563
    %v565 = vpop.f32.mrf.mxu0
    %v566 = vadd.f32 %v491, %v565
    %v567 = vpop.f32.mrf.mxu0
    %v568 = vadd.f32 %v491, %v567
    %569 = vdwg.mxu0
    %v570 = vmax.f32 %v552, 0.0
    %v571 = vmax.f32 %v554, 0.0
    %v572 = vmax.f32 %v556, 0.0
    %v573 = vmax.f32 %v558, 0.0
    %v574 = vmax.f32 %v562, 0.0
    %v575 = vmax.f32 %v564, 0.0
    %v576 = vmax.f32 %v566, 0.0
    %v577 = vmax.f32 %v568, 0.0
    %v578 = vld [vmem:[%s5] sm:$0xf]
    %v579 = vpack.c.bf16 %v572, %v570
    %v580 = vpack.c.bf16 %v573, %v571
    %v581 = vpack.c.bf16 %v576, %v574
    %v582 = vpack.c.bf16 %v577, %v575
    %v583 = vld [vmem:[%s6 + $0x38] sm:$0xff]
    %585 = vset.pattern.permute.xlu0 0
    %586 = vperm.xlu0 %585, %v583
    %v587 = vpop.permute.xlu0 %586
    %vm589 = vcmask 261120
    %v591 = vsel %vm589, %v578, 0
    %593 = vmatprep.subr.bf16.mxu0 0
    %594 = vmatpush1.bf16.msra.mxu0 0
    %595 = vmatprep.subr.bf16.mxu0 0
    %596 = vmatpush1.bf16.msra.mxu0 0
    %597 = vmatprep.subr.bf16.mxu0 0
    %598 = vmatpush1.bf16.msra.mxu0 0
    %599 = vmatprep.subr.bf16.mxu0 0
    %600 = vmatpush1.bf16.msra.mxu0 0
    %601 = vmatprep.subr.bf16.mxu0 0
    %602 = vmatpush1.bf16.msra.mxu0 0
    %603 = vmatprep.subr.bf16.mxu0 0
    %604 = vmatpush1.bf16.msra.mxu0 0
    %605 = vmatprep.subr.bf16.mxu0 %v582
    %606 = vmatpush1.bf16.msra.mxu0 %v581
    %607 = vmatprep.subr.bf16.mxu0 %v580
    %608 = vmatpush1.bf16.msra.mxu0 %v579
    %609 = vmatprep.subr.bf16.mxu0 0
    %610 = vmatpush2.bf16.msra.mxu0 0
    %611 = vmatprep.subr.bf16.mxu0 0
    %612 = vmatpush2.bf16.msra.mxu0 0
    %613 = vmatprep.subr.bf16.mxu0 0
    %614 = vmatpush2.bf16.msra.mxu0 0
    %615 = vmatprep.subr.bf16.mxu0 0
    %616 = vmatpush2.bf16.msra.mxu0 0
    %617 = vmatprep.subr.bf16.mxu0 0
    %618 = vmatpush2.bf16.msra.mxu0 0
    %619 = vmatprep.subr.bf16.mxu0 0
    %620 = vmatpush2.bf16.msra.mxu0 0
    %621 = vmatprep.subr.bf16.mxu0 0
    %622 = vmatpush2.bf16.msra.mxu0 0
    %623 = vmatprep.subr.bf16.mxu0 0
    %624 = vmatpush2.bf16.msra.mxu0 0
    %625 = vmatprep.mubr.bf16.mxu0 0
    %626 = vmatmul.mubr.bf16.gmra.mxu0 %v591
    %v627 = vpop.f32.mrf.mxu0
    %v628 = vadd.f32 %v587, %v627
    %v629 = vpop.f32.mrf.mxu0
    %v630 = vadd.f32 %v587, %v629
    %v631 = vpop.f32.mrf.mxu0
    %v632 = vpop.f32.mrf.mxu0
    %633 = vdwg.mxu0
    %v634 = vmax.f32 %v628, 0.0
    %v635 = vmax.f32 %v630, 0.0
    %636 = vst [vmem:[#allocation5] sm:$0xff] %v634
    %637 = vst [vmem:[#allocation5 + $0x8] sm:$0xff] %v635
    // Predicated region
    $region34: #{tpu_custom_call.1} parent=1 // pred_check
      _
    $region35: #{tpu_custom_call.1} parent=1 // pred_check_branch
      %639 = sbr.rel (0) target = $region37
    $region36: #{tpu_custom_call.1} parent=1 // pred_region
      %s641 = ssub.s32 256, 256
      %642 = vsyncadd [#allocation4], %s641
      %s644 = sshll.u32 [#allocation5], 4
      %s645 = int_to_ptr.vmem [resolvable:$true] %s644
      %647 = dma.vmem_to_hbm [thread:$0]  %s645, 256, %s7, [#allocation4]
    $region37: #{tpu_custom_call.1} parent=1 // pred_fallthru
      _
    // Predicated region
    $region38: #{tpu_custom_call.1} parent=1 // pred_check
      _
    $region39: #{tpu_custom_call.1} parent=1 // pred_check_branch
      %649 = sbr.rel (0) target = $region41
    $region40: #{tpu_custom_call.1} parent=1 // pred_region
      %650 = dma.done [#allocation4], 256
    $region41: #{tpu_custom_call.1} parent=1 // pred_fallthru
      _
    %651 = vsyncpa [#allocation3], 1
    %652 = vsyncpa [#allocation4], 1

</llo_original>
